<compile_context>
chip_gen: v7x
topology: tpu7x:2x2x1
jax: 0.10.0
libtpu: 0.0.40
codegen_flags: <defaults>
</compile_context>

<pallas_src>
import functools

import jax
import jax.numpy as jnp
from jax.experimental import pallas as pl
from jax.experimental.pallas import tpu as pltpu


# ----------------------------------------------------------------------------
# Pallas kernel: one grid step == one modality (query = that modality,
# key/value = total - query), full batch processed inside the step.
# ----------------------------------------------------------------------------
def _fused_inter_modality_kernel(q_ref, tot_ref,
                                 wq_ref, wk_ref, wv_ref, wo_ref,
                                 bq_ref, bk_ref, bv_ref, bo_ref,
                                 gamma_ref, beta_ref,
                                 out_ref,
                                 *, num_heads, head_dim, eps):
    f32, bf16 = jnp.float32, jnp.bfloat16
    H, D = num_heads, head_dim
    E = H * D
    _, B, S, _ = q_ref.shape           # block (1, B, S, E)
    M = B * S

    x3 = q_ref[0]                      # (B, S, E) f32   query modality
    kv3 = tot_ref[...] - x3            # (B, S, E) f32   sum of the other two

    x = x3.reshape(M, E)               # batch-major flatten: free view
    kv = kv3.reshape(M, E)
    xb = x.astype(bf16)
    kvb = kv.astype(bf16)

    wq = wq_ref[0]                     # (E, E) bf16  (softmax scale folded in)
    wk = wk_ref[0]
    wv = wv_ref[0]
    wo = wo_ref[0]
    bq = bq_ref[0]                     # (1, E) f32   (scale folded in)
    bk = bk_ref[0]
    bv = bv_ref[0]
    bo = bo_ref[0]

    # Dense projections: (B*S, E) @ (E, E), f32 accumulation.
    q = jnp.dot(xb, wq, preferred_element_type=f32) + bq
    k = jnp.dot(kvb, wk, preferred_element_type=f32) + bk
    v = jnp.dot(kvb, wv, preferred_element_type=f32) + bv

    # Head split: (B*S, E) -> (B*H, S, D) via static lane slices + stack
    # (pure layout permutation, no lax.transpose).
    def split_heads(t):
        tb = t.astype(bf16)
        th = jnp.stack([tb[:, h * D:(h + 1) * D] for h in range(H)], axis=0)
        return th.reshape(H * B, S, D)          # batch index n = h*B + b

    qh = split_heads(q)
    kh = split_heads(k)
    vh = split_heads(v)

    # Flash-style batched attention einsums (single leading batch dim).
    s = jnp.einsum("nqd,nkd->nqk", qh, kh,
                   preferred_element_type=f32)              # (B*H, S, S) f32
    s = s - jnp.max(s, axis=-1, keepdims=True)
    p = jnp.exp(s)
    # approx reciprocal -> attention rows sum to ~1 (EUP slot, documented).
    p = p * pl.reciprocal(jnp.sum(p, axis=-1, keepdims=True), approx=True)
    # TODO(synk): attention-weight / residual dropout (training mode) omitted;
    # eval mode = identity.

    o = jnp.einsum("nqk,nkd->nqd", p.astype(bf16), vh,
                   preferred_element_type=f32)              # (B*H, S, D) f32

    # Merge heads back to (B*S, E): leading-dim index + lane concat.
    o2 = o.astype(bf16).reshape(H, M, D)
    o_merged = jnp.concatenate([o2[h] for h in range(H)], axis=-1)   # (M, E)

    # Output projection: the head-sum is inside the (E, E) contraction.
    attn = jnp.dot(o_merged, wo, preferred_element_type=f32) + bo    # (M, E)

    # Residual + LayerNorm over E (f32 statistics).
    y = x + attn
    mu = jnp.mean(y, axis=-1, keepdims=True)
    var = jnp.mean((y - mu) ** 2, axis=-1, keepdims=True)
    y = (y - mu) * jax.lax.rsqrt(var + eps)
    y = y * gamma_ref[0] + beta_ref[0]

    out_ref[0] = y.reshape(B, S, E)            # one dense store per modality


# ----------------------------------------------------------------------------
# Wrapper: parameter prep (scale folding, lane-dense layouts, bf16 weights)
# + a single fused pallas_call with grid=(3,) over modality.
# ----------------------------------------------------------------------------
def inter_modality_attention(imu, rgb, pose, params, *, num_heads, eps=1e-5):
    """imu/rgb/pose: (S, B, E) seq-first (PyTorch MHA default layout)."""
    S, B, E = imu.shape
    H = num_heads
    assert E % H == 0
    D = E // H
    f32, bf16 = jnp.float32, jnp.bfloat16
    scale = 1.0 / (D ** 0.5)

    # one-time parameter prep (tiny; would be precomputed in a real model)
    def prep(p):
        return ((p["wq"] * scale).astype(bf16),          # fold softmax scale
                p["wk"].astype(bf16),
                p["wv"].astype(bf16),
                p["wo"].astype(bf16),
                (p["bq"] * scale).astype(f32).reshape(1, E),
                p["bk"].astype(f32).reshape(1, E),
                p["bv"].astype(f32).reshape(1, E),
                p["bo"].astype(f32).reshape(1, E),
                p["gamma"].astype(f32).reshape(1, E),
                p["beta"].astype(f32).reshape(1, E))

    prepped = [prep(params[k]) for k in ("imu", "rgb", "pose")]
    stk = lambda i: jnp.stack([t[i] for t in prepped])
    wq_all, wk_all, wv_all, wo_all = stk(0), stk(1), stk(2), stk(3)  # (3,E,E)
    bq_all, bk_all, bv_all, bo_all = stk(4), stk(5), stk(6), stk(7)  # (3,1,E)
    g_all, bt_all = stk(8), stk(9)

    # batch-major activation layout: stacked queries + one shared total
    # (kv = total - query is formed inside the kernel -> 2 slabs DMA per step).
    q_stack = jnp.stack([imu, rgb, pose]).transpose(0, 2, 1, 3)      # (3,B,S,E)
    total = (imu + rgb + pose).transpose(1, 0, 2)                    # (B,S,E)

    kernel = functools.partial(_fused_inter_modality_kernel,
                               num_heads=H, head_dim=D, eps=eps)

    q_spec = pl.BlockSpec((1, B, S, E), lambda m: (m, 0, 0, 0))
    tot_spec = pl.BlockSpec((B, S, E), lambda m: (0, 0, 0))
    w_spec = pl.BlockSpec((1, E, E), lambda m: (m, 0, 0))
    b_spec = pl.BlockSpec((1, 1, E), lambda m: (m, 0, 0))
    out_spec = pl.BlockSpec((1, B, S, E), lambda m: (m, 0, 0, 0))

    out = pl.pallas_call(
        kernel,
        out_shape=jax.ShapeDtypeStruct((3, B, S, E), f32),
        grid=(3,),
        in_specs=[q_spec, tot_spec,
                  w_spec, w_spec, w_spec, w_spec,
                  b_spec, b_spec, b_spec, b_spec,
                  b_spec, b_spec],
        out_specs=out_spec,
        compiler_params=pltpu.CompilerParams(
            dimension_semantics=("parallel",),
            vmem_limit_bytes=48 * 1024 * 1024),
    )(q_stack, total,
      wq_all, wk_all, wv_all, wo_all,
      bq_all, bk_all, bv_all, bo_all,
      g_all, bt_all)

    out = out.transpose(0, 2, 1, 3)            # back to seq-first (3, S, B, E)
    return out[0], out[1], out[2]


# ----------------------------------------------------------------------------
# Parameter construction (deterministic, synthetic)
# ----------------------------------------------------------------------------
def make_block_params(key, embed_size):
    ks = jax.random.split(key, 8)
    scale = 0.05
    f32 = jnp.float32
    return {
        # weights stored already-transposed so y = x @ w (+ b)
        "wq": scale * jax.random.normal(ks[0], (embed_size, embed_size), f32),
        "wk": scale * jax.random.normal(ks[1], (embed_size, embed_size), f32),
        "wv": scale * jax.random.normal(ks[2], (embed_size, embed_size), f32),
        "wo": scale * jax.random.normal(ks[3], (embed_size, embed_size), f32),
        "bq": scale * jax.random.normal(ks[4], (1, embed_size), f32),
        "bk": scale * jax.random.normal(ks[5], (1, embed_size), f32),
        "bv": scale * jax.random.normal(ks[6], (1, embed_size), f32),
        "bo": scale * jax.random.normal(ks[7], (1, embed_size), f32),
        "gamma": jnp.ones((1, embed_size), f32),
        "beta": jnp.zeros((1, embed_size), f32),
    }


def make_params(key, embed_size):
    k1, k2, k3 = jax.random.split(key, 3)
    return {
        "imu": make_block_params(k1, embed_size),
        "rgb": make_block_params(k2, embed_size),
        "pose": make_block_params(k3, embed_size),
    }


# ----------------------------------------------------------------------------
# Pure-JAX f32 reference (same math) for a correctness sanity check
# ----------------------------------------------------------------------------
def _ref_block(query, kv, p, num_heads, eps=1e-5):
    S, B, E = query.shape
    D = E // num_heads
    hp = jax.lax.Precision.HIGHEST
    x = jnp.transpose(query, (1, 0, 2))
    kvb = jnp.transpose(kv, (1, 0, 2))
    Q = jnp.einsum("bse,ef->bsf", x, p["wq"], precision=hp) + p["bq"]
    K = jnp.einsum("bse,ef->bsf", kvb, p["wk"], precision=hp) + p["bk"]
    V = jnp.einsum("bse,ef->bsf", kvb, p["wv"], precision=hp) + p["bv"]
    Qh = Q.reshape(B, S, num_heads, D)
    Kh = K.reshape(B, S, num_heads, D)
    Vh = V.reshape(B, S, num_heads, D)
    s = jnp.einsum("bqhd,bkhd->bhqk", Qh, Kh, precision=hp) / jnp.sqrt(
        jnp.float32(D))
    probs = jax.nn.softmax(s, axis=-1)
    O = jnp.einsum("bhqk,bkhd->bqhd", probs, Vh, precision=hp).reshape(B, S, E)
    attn = jnp.einsum("bse,ef->bsf", O, p["wo"], precision=hp) + p["bo"]
    y = x + attn
    mu = jnp.mean(y, axis=-1, keepdims=True)
    var = jnp.mean((y - mu) ** 2, axis=-1, keepdims=True)
    out = (y - mu) / jnp.sqrt(var + eps) * p["gamma"] + p["beta"]
    return jnp.transpose(out, (1, 0, 2))


def _ref_forward(imu, rgb, pose, params, num_heads):
    return (_ref_block(imu, rgb + pose, params["imu"], num_heads),
            _ref_block(rgb, imu + pose, params["rgb"], num_heads),
            _ref_block(pose, imu + rgb, params["pose"], num_heads))


# ----------------------------------------------------------------------------
if __name__ == "__main__":
    embed_size = 32
    num_heads = 4
    seq_len = 8
    batch = 2

    key = jax.random.PRNGKey(0)
    k_imu, k_rgb, k_pose, k_params = jax.random.split(key, 4)

    # PyTorch MHA default layout: (seq, batch, embed)
    imu = jax.random.normal(k_imu, (seq_len, batch, embed_size), jnp.float32)
    rgb = jax.random.normal(k_rgb, (seq_len, batch, embed_size), jnp.float32)
    pose = jax.random.normal(k_pose, (seq_len, batch, embed_size), jnp.float32)

    params = make_params(k_params, embed_size)

    fwd = jax.jit(functools.partial(inter_modality_attention,
                                    num_heads=num_heads))
    imu_out, rgb_out, pose_out = fwd(imu, rgb, pose, params)
    jax.block_until_ready((imu_out, rgb_out, pose_out))

    # sanity check against a pure-JAX f32 reference (kernel uses bf16 matmuls)
    ref = _ref_forward(imu, rgb, pose, params, num_heads)
    for got, want in zip((imu_out, rgb_out, pose_out), ref):
        assert got.shape == want.shape
        err = float(jnp.max(jnp.abs(got - want)))
        assert err < 3e-2, err

    print("KERNEL_OK")
</pallas_src>

<mosaic_0001>
module attributes {stable_mosaic.version = 11 : i64} {
  func.func @_fused_inter_modality_kernel(%arg0: i32, %arg1: memref<1x2x8x32xf32, #tpu.memory_space<vmem>>, %arg2: memref<2x8x32xf32, #tpu.memory_space<vmem>>, %arg3: memref<1x32x32xbf16, #tpu.memory_space<vmem>>, %arg4: memref<1x32x32xbf16, #tpu.memory_space<vmem>>, %arg5: memref<1x32x32xbf16, #tpu.memory_space<vmem>>, %arg6: memref<1x32x32xbf16, #tpu.memory_space<vmem>>, %arg7: memref<1x1x32xf32, #tpu.memory_space<vmem>>, %arg8: memref<1x1x32xf32, #tpu.memory_space<vmem>>, %arg9: memref<1x1x32xf32, #tpu.memory_space<vmem>>, %arg10: memref<1x1x32xf32, #tpu.memory_space<vmem>>, %arg11: memref<1x1x32xf32, #tpu.memory_space<vmem>>, %arg12: memref<1x1x32xf32, #tpu.memory_space<vmem>>, %arg13: memref<1x2x8x32xf32, #tpu.memory_space<vmem>>) attributes {dimension_semantics = [#tpu.dimension_semantics<parallel>], iteration_bounds = array<i64: 3>, scalar_prefetch = 0 : i64, scratch_operands = 0 : i64, tpu.core_type = #tpu.core_type<tc>, window_params = [{transform_indices = @transform_0, window_bounds = array<i64: 1, 2, 8, 32>}, {pipeline_mode = #tpu.pipeline_mode<synchronous>, transform_indices = @transform_1, window_bounds = array<i64: 2, 8, 32>}, {transform_indices = @transform_2, window_bounds = array<i64: 1, 32, 32>}, {transform_indices = @transform_3, window_bounds = array<i64: 1, 32, 32>}, {transform_indices = @transform_4, window_bounds = array<i64: 1, 32, 32>}, {transform_indices = @transform_5, window_bounds = array<i64: 1, 32, 32>}, {transform_indices = @transform_6, window_bounds = array<i64: 1, 1, 32>}, {transform_indices = @transform_7, window_bounds = array<i64: 1, 1, 32>}, {transform_indices = @transform_8, window_bounds = array<i64: 1, 1, 32>}, {transform_indices = @transform_9, window_bounds = array<i64: 1, 1, 32>}, {transform_indices = @transform_10, window_bounds = array<i64: 1, 1, 32>}, {transform_indices = @transform_11, window_bounds = array<i64: 1, 1, 32>}, {transform_indices = @transform_12, window_bounds = array<i64: 1, 2, 8, 32>}]} {
    %c0 = arith.constant 0 : index
    %c0_0 = arith.constant 0 : index
    %c0_1 = arith.constant 0 : index
    %c0_2 = arith.constant 0 : index
    %0 = vector.load %arg1[%c0, %c0_0, %c0_1, %c0_2] : memref<1x2x8x32xf32, #tpu.memory_space<vmem>>, vector<1x2x8x32xf32>
    %1 = vector.shape_cast %0 : vector<1x2x8x32xf32> to vector<2x8x32xf32>
    %c0_3 = arith.constant 0 : index
    %c0_4 = arith.constant 0 : index
    %c0_5 = arith.constant 0 : index
    %2 = vector.load %arg2[%c0_3, %c0_4, %c0_5] : memref<2x8x32xf32, #tpu.memory_space<vmem>>, vector<2x8x32xf32>
    %3 = arith.subf %2, %1 : vector<2x8x32xf32>
    %4 = vector.shape_cast %1 : vector<2x8x32xf32> to vector<16x32xf32>
    %5 = vector.shape_cast %3 : vector<2x8x32xf32> to vector<16x32xf32>
    %6 = arith.truncf %4 : vector<16x32xf32> to vector<16x32xbf16>
    %7 = arith.truncf %5 : vector<16x32xf32> to vector<16x32xbf16>
    %c0_6 = arith.constant 0 : index
    %c0_7 = arith.constant 0 : index
    %c0_8 = arith.constant 0 : index
    %8 = vector.load %arg3[%c0_6, %c0_7, %c0_8] : memref<1x32x32xbf16, #tpu.memory_space<vmem>>, vector<1x32x32xbf16>
    %9 = vector.shape_cast %8 : vector<1x32x32xbf16> to vector<32x32xbf16>
    %c0_9 = arith.constant 0 : index
    %c0_10 = arith.constant 0 : index
    %c0_11 = arith.constant 0 : index
    %10 = vector.load %arg4[%c0_9, %c0_10, %c0_11] : memref<1x32x32xbf16, #tpu.memory_space<vmem>>, vector<1x32x32xbf16>
    %11 = vector.shape_cast %10 : vector<1x32x32xbf16> to vector<32x32xbf16>
    %c0_12 = arith.constant 0 : index
    %c0_13 = arith.constant 0 : index
    %c0_14 = arith.constant 0 : index
    %12 = vector.load %arg5[%c0_12, %c0_13, %c0_14] : memref<1x32x32xbf16, #tpu.memory_space<vmem>>, vector<1x32x32xbf16>
    %13 = vector.shape_cast %12 : vector<1x32x32xbf16> to vector<32x32xbf16>
    %c0_15 = arith.constant 0 : index
    %c0_16 = arith.constant 0 : index
    %c0_17 = arith.constant 0 : index
    %14 = vector.load %arg6[%c0_15, %c0_16, %c0_17] : memref<1x32x32xbf16, #tpu.memory_space<vmem>>, vector<1x32x32xbf16>
    %15 = vector.shape_cast %14 : vector<1x32x32xbf16> to vector<32x32xbf16>
    %c0_18 = arith.constant 0 : index
    %c0_19 = arith.constant 0 : index
    %c0_20 = arith.constant 0 : index
    %16 = vector.load %arg7[%c0_18, %c0_19, %c0_20] : memref<1x1x32xf32, #tpu.memory_space<vmem>>, vector<1x1x32xf32>
    %17 = vector.shape_cast %16 : vector<1x1x32xf32> to vector<1x32xf32>
    %c0_21 = arith.constant 0 : index
    %c0_22 = arith.constant 0 : index
    %c0_23 = arith.constant 0 : index
    %18 = vector.load %arg8[%c0_21, %c0_22, %c0_23] : memref<1x1x32xf32, #tpu.memory_space<vmem>>, vector<1x1x32xf32>
    %19 = vector.shape_cast %18 : vector<1x1x32xf32> to vector<1x32xf32>
    %c0_24 = arith.constant 0 : index
    %c0_25 = arith.constant 0 : index
    %c0_26 = arith.constant 0 : index
    %20 = vector.load %arg9[%c0_24, %c0_25, %c0_26] : memref<1x1x32xf32, #tpu.memory_space<vmem>>, vector<1x1x32xf32>
    %21 = vector.shape_cast %20 : vector<1x1x32xf32> to vector<1x32xf32>
    %c0_27 = arith.constant 0 : index
    %c0_28 = arith.constant 0 : index
    %c0_29 = arith.constant 0 : index
    %22 = vector.load %arg10[%c0_27, %c0_28, %c0_29] : memref<1x1x32xf32, #tpu.memory_space<vmem>>, vector<1x1x32xf32>
    %23 = vector.shape_cast %22 : vector<1x1x32xf32> to vector<1x32xf32>
    %cst = arith.constant dense<0.000000e+00> : vector<16x32xf32>
    %24 = tpu.matmul %6, %9, %cst {dimension_numbers = #tpu.dot_dimension_numbers<[1], [0], [0], [1], [0, 0, 1, 1], [], []>} : vector<16x32xbf16>, vector<32x32xbf16>, vector<16x32xf32> -> vector<16x32xf32>
    %25 = vector.broadcast %17 : vector<1x32xf32> to vector<16x32xf32>
    %26 = arith.addf %24, %25 : vector<16x32xf32>
    %cst_30 = arith.constant dense<0.000000e+00> : vector<16x32xf32>
    %27 = tpu.matmul %7, %11, %cst_30 {dimension_numbers = #tpu.dot_dimension_numbers<[1], [0], [0], [1], [0, 0, 1, 1], [], []>} : vector<16x32xbf16>, vector<32x32xbf16>, vector<16x32xf32> -> vector<16x32xf32>
    %28 = vector.broadcast %19 : vector<1x32xf32> to vector<16x32xf32>
    %29 = arith.addf %27, %28 : vector<16x32xf32>
    %cst_31 = arith.constant dense<0.000000e+00> : vector<16x32xf32>
    %30 = tpu.matmul %7, %13, %cst_31 {dimension_numbers = #tpu.dot_dimension_numbers<[1], [0], [0], [1], [0, 0, 1, 1], [], []>} : vector<16x32xbf16>, vector<32x32xbf16>, vector<16x32xf32> -> vector<16x32xf32>
    %31 = vector.broadcast %21 : vector<1x32xf32> to vector<16x32xf32>
    %32 = arith.addf %30, %31 : vector<16x32xf32>
    %33 = arith.truncf %26 : vector<16x32xf32> to vector<16x32xbf16>
    %34 = vector.extract_strided_slice %33 {offsets = [0, 0], sizes = [16, 8], strides = [1, 1]} : vector<16x32xbf16> to vector<16x8xbf16>
    %35 = vector.extract_strided_slice %33 {offsets = [0, 8], sizes = [16, 8], strides = [1, 1]} : vector<16x32xbf16> to vector<16x8xbf16>
    %36 = vector.extract_strided_slice %33 {offsets = [0, 16], sizes = [16, 8], strides = [1, 1]} : vector<16x32xbf16> to vector<16x8xbf16>
    %37 = vector.extract_strided_slice %33 {offsets = [0, 24], sizes = [16, 8], strides = [1, 1]} : vector<16x32xbf16> to vector<16x8xbf16>
    %38 = vector.shape_cast %34 : vector<16x8xbf16> to vector<1x16x8xbf16>
    %39 = vector.shape_cast %35 : vector<16x8xbf16> to vector<1x16x8xbf16>
    %40 = vector.shape_cast %36 : vector<16x8xbf16> to vector<1x16x8xbf16>
    %41 = vector.shape_cast %37 : vector<16x8xbf16> to vector<1x16x8xbf16>
    %42 = tpu.concatenate %38, %39, %40, %41 in 0 : vector<1x16x8xbf16>, vector<1x16x8xbf16>, vector<1x16x8xbf16>, vector<1x16x8xbf16> -> vector<4x16x8xbf16>
    %43 = vector.shape_cast %42 : vector<4x16x8xbf16> to vector<8x8x8xbf16>
    %44 = arith.truncf %29 : vector<16x32xf32> to vector<16x32xbf16>
    %45 = vector.extract_strided_slice %44 {offsets = [0, 0], sizes = [16, 8], strides = [1, 1]} : vector<16x32xbf16> to vector<16x8xbf16>
    %46 = vector.extract_strided_slice %44 {offsets = [0, 8], sizes = [16, 8], strides = [1, 1]} : vector<16x32xbf16> to vector<16x8xbf16>
    %47 = vector.extract_strided_slice %44 {offsets = [0, 16], sizes = [16, 8], strides = [1, 1]} : vector<16x32xbf16> to vector<16x8xbf16>
    %48 = vector.extract_strided_slice %44 {offsets = [0, 24], sizes = [16, 8], strides = [1, 1]} : vector<16x32xbf16> to vector<16x8xbf16>
    %49 = vector.shape_cast %45 : vector<16x8xbf16> to vector<1x16x8xbf16>
    %50 = vector.shape_cast %46 : vector<16x8xbf16> to vector<1x16x8xbf16>
    %51 = vector.shape_cast %47 : vector<16x8xbf16> to vector<1x16x8xbf16>
    %52 = vector.shape_cast %48 : vector<16x8xbf16> to vector<1x16x8xbf16>
    %53 = tpu.concatenate %49, %50, %51, %52 in 0 : vector<1x16x8xbf16>, vector<1x16x8xbf16>, vector<1x16x8xbf16>, vector<1x16x8xbf16> -> vector<4x16x8xbf16>
    %54 = vector.shape_cast %53 : vector<4x16x8xbf16> to vector<8x8x8xbf16>
    %55 = arith.truncf %32 : vector<16x32xf32> to vector<16x32xbf16>
    %56 = vector.extract_strided_slice %55 {offsets = [0, 0], sizes = [16, 8], strides = [1, 1]} : vector<16x32xbf16> to vector<16x8xbf16>
    %57 = vector.extract_strided_slice %55 {offsets = [0, 8], sizes = [16, 8], strides = [1, 1]} : vector<16x32xbf16> to vector<16x8xbf16>
    %58 = vector.extract_strided_slice %55 {offsets = [0, 16], sizes = [16, 8], strides = [1, 1]} : vector<16x32xbf16> to vector<16x8xbf16>
    %59 = vector.extract_strided_slice %55 {offsets = [0, 24], sizes = [16, 8], strides = [1, 1]} : vector<16x32xbf16> to vector<16x8xbf16>
    %60 = vector.shape_cast %56 : vector<16x8xbf16> to vector<1x16x8xbf16>
    %61 = vector.shape_cast %57 : vector<16x8xbf16> to vector<1x16x8xbf16>
    %62 = vector.shape_cast %58 : vector<16x8xbf16> to vector<1x16x8xbf16>
    %63 = vector.shape_cast %59 : vector<16x8xbf16> to vector<1x16x8xbf16>
    %64 = tpu.concatenate %60, %61, %62, %63 in 0 : vector<1x16x8xbf16>, vector<1x16x8xbf16>, vector<1x16x8xbf16>, vector<1x16x8xbf16> -> vector<4x16x8xbf16>
    %65 = vector.shape_cast %64 : vector<4x16x8xbf16> to vector<8x8x8xbf16>
    "tpu.trace_start"() <{level = 10 : i32, message = "nqd,nkd->nqk"}> : () -> ()
    %cst_32 = arith.constant dense<0.000000e+00> : vector<8x8x8xf32>
    %66 = tpu.matmul %43, %54, %cst_32 {dimension_numbers = #tpu.dot_dimension_numbers<[2], [2], [1], [1], [0, 0, 0, 1, 1, 1], [0], [0]>} : vector<8x8x8xbf16>, vector<8x8x8xbf16>, vector<8x8x8xf32> -> vector<8x8x8xf32>
    "tpu.trace_stop"() : () -> ()
    %cst_33 = arith.constant dense<0xFF800000> : vector<8x8xf32>
    %67 = vector.multi_reduction <maximumf>, %66, %cst_33 [2] : vector<8x8x8xf32> to vector<8x8xf32>
    %68 = vector.shape_cast %67 : vector<8x8xf32> to vector<8x8x1xf32>
    %69 = vector.broadcast %68 : vector<8x8x1xf32> to vector<8x8x8xf32>
    %70 = arith.subf %66, %69 : vector<8x8x8xf32>
    %71 = math.exp %70 : vector<8x8x8xf32>
    %cst_34 = arith.constant dense<0.000000e+00> : vector<8x8xf32>
    %72 = vector.multi_reduction <add>, %71, %cst_34 [2] : vector<8x8x8xf32> to vector<8x8xf32>
    %73 = vector.shape_cast %72 : vector<8x8xf32> to vector<8x8x1xf32>
    %74 = tpu.reciprocal %73 {approx = true} : vector<8x8x1xf32> -> vector<8x8x1xf32>
    %75 = vector.broadcast %74 : vector<8x8x1xf32> to vector<8x8x8xf32>
    %76 = arith.mulf %71, %75 : vector<8x8x8xf32>
    %77 = arith.truncf %76 : vector<8x8x8xf32> to vector<8x8x8xbf16>
    "tpu.trace_start"() <{level = 10 : i32, message = "nqk,nkd->nqd"}> : () -> ()
    %cst_35 = arith.constant dense<0.000000e+00> : vector<8x8x8xf32>
    %78 = tpu.matmul %77, %65, %cst_35 {dimension_numbers = #tpu.dot_dimension_numbers<[2], [1], [1], [2], [0, 0, 0, 1, 1, 2], [0], [0]>} : vector<8x8x8xbf16>, vector<8x8x8xbf16>, vector<8x8x8xf32> -> vector<8x8x8xf32>
    "tpu.trace_stop"() : () -> ()
    %79 = arith.truncf %78 : vector<8x8x8xf32> to vector<8x8x8xbf16>
    %80 = vector.shape_cast %79 : vector<8x8x8xbf16> to vector<4x16x8xbf16>
    %81 = vector.extract_strided_slice %80 {offsets = [0, 0, 0], sizes = [1, 16, 8], strides = [1, 1, 1]} : vector<4x16x8xbf16> to vector<1x16x8xbf16>
    %82 = vector.shape_cast %81 : vector<1x16x8xbf16> to vector<16x8xbf16>
    %83 = vector.extract_strided_slice %80 {offsets = [1, 0, 0], sizes = [1, 16, 8], strides = [1, 1, 1]} : vector<4x16x8xbf16> to vector<1x16x8xbf16>
    %84 = vector.shape_cast %83 : vector<1x16x8xbf16> to vector<16x8xbf16>
    %85 = vector.extract_strided_slice %80 {offsets = [2, 0, 0], sizes = [1, 16, 8], strides = [1, 1, 1]} : vector<4x16x8xbf16> to vector<1x16x8xbf16>
    %86 = vector.shape_cast %85 : vector<1x16x8xbf16> to vector<16x8xbf16>
    %87 = vector.extract_strided_slice %80 {offsets = [3, 0, 0], sizes = [1, 16, 8], strides = [1, 1, 1]} : vector<4x16x8xbf16> to vector<1x16x8xbf16>
    %88 = vector.shape_cast %87 : vector<1x16x8xbf16> to vector<16x8xbf16>
    %89 = tpu.concatenate %82, %84, %86, %88 in 1 : vector<16x8xbf16>, vector<16x8xbf16>, vector<16x8xbf16>, vector<16x8xbf16> -> vector<16x32xbf16>
    %cst_36 = arith.constant dense<0.000000e+00> : vector<16x32xf32>
    %90 = tpu.matmul %89, %15, %cst_36 {dimension_numbers = #tpu.dot_dimension_numbers<[1], [0], [0], [1], [0, 0, 1, 1], [], []>} : vector<16x32xbf16>, vector<32x32xbf16>, vector<16x32xf32> -> vector<16x32xf32>
    %91 = vector.broadcast %23 : vector<1x32xf32> to vector<16x32xf32>
    %92 = arith.addf %90, %91 : vector<16x32xf32>
    %93 = arith.addf %4, %92 : vector<16x32xf32>
    %cst_37 = arith.constant dense<0.000000e+00> : vector<16xf32>
    %94 = vector.multi_reduction <add>, %93, %cst_37 [1] : vector<16x32xf32> to vector<16xf32>
    %95 = vector.shape_cast %94 : vector<16xf32> to vector<16x1xf32>
    %cst_38 = arith.constant 3.200000e+01 : f32
    %96 = vector.broadcast %cst_38 : f32 to vector<16x1xf32>
    %97 = arith.divf %95, %96 : vector<16x1xf32>
    %98 = vector.broadcast %97 : vector<16x1xf32> to vector<16x32xf32>
    %99 = arith.subf %93, %98 : vector<16x32xf32>
    %100 = arith.mulf %99, %99 : vector<16x32xf32>
    %cst_39 = arith.constant dense<0.000000e+00> : vector<16xf32>
    %101 = vector.multi_reduction <add>, %100, %cst_39 [1] : vector<16x32xf32> to vector<16xf32>
    %102 = vector.shape_cast %101 : vector<16xf32> to vector<16x1xf32>
    %cst_40 = arith.constant 3.200000e+01 : f32
    %103 = vector.broadcast %cst_40 : f32 to vector<16x1xf32>
    %104 = arith.divf %102, %103 : vector<16x1xf32>
    %105 = vector.broadcast %97 : vector<16x1xf32> to vector<16x32xf32>
    %106 = arith.subf %93, %105 : vector<16x32xf32>
    %cst_41 = arith.constant 9.99999974E-6 : f32
    %107 = vector.broadcast %cst_41 : f32 to vector<16x1xf32>
    %108 = arith.addf %104, %107 : vector<16x1xf32>
    %109 = math.rsqrt %108 : vector<16x1xf32>
    %110 = vector.broadcast %109 : vector<16x1xf32> to vector<16x32xf32>
    %111 = arith.mulf %106, %110 : vector<16x32xf32>
    %c0_42 = arith.constant 0 : index
    %c0_43 = arith.constant 0 : index
    %c0_44 = arith.constant 0 : index
    %112 = vector.load %arg11[%c0_42, %c0_43, %c0_44] : memref<1x1x32xf32, #tpu.memory_space<vmem>>, vector<1x1x32xf32>
    %113 = vector.shape_cast %112 : vector<1x1x32xf32> to vector<1x32xf32>
    %114 = vector.broadcast %113 : vector<1x32xf32> to vector<16x32xf32>
    %115 = arith.mulf %111, %114 : vector<16x32xf32>
    %c0_45 = arith.constant 0 : index
    %c0_46 = arith.constant 0 : index
    %c0_47 = arith.constant 0 : index
    %116 = vector.load %arg12[%c0_45, %c0_46, %c0_47] : memref<1x1x32xf32, #tpu.memory_space<vmem>>, vector<1x1x32xf32>
    %117 = vector.shape_cast %116 : vector<1x1x32xf32> to vector<1x32xf32>
    %118 = vector.broadcast %117 : vector<1x32xf32> to vector<16x32xf32>
    %119 = arith.addf %115, %118 : vector<16x32xf32>
    %120 = vector.shape_cast %119 : vector<16x32xf32> to vector<2x8x32xf32>
    %c0_48 = arith.constant 0 : index
    %c0_49 = arith.constant 0 : index
    %c0_50 = arith.constant 0 : index
    %c0_51 = arith.constant 0 : index
    %121 = vector.load %arg13[%c0_48, %c0_49, %c0_50, %c0_51] : memref<1x2x8x32xf32, #tpu.memory_space<vmem>>, vector<1x2x8x32xf32>
    %122 = vector.shape_cast %121 : vector<1x2x8x32xf32> to vector<2x8x32xf32>
    %123 = vector.shape_cast %120 : vector<2x8x32xf32> to vector<1x2x8x32xf32>
    tpu.vector_store %arg13[%c0_48, %c0_49, %c0_50, %c0_51], %123 {strides = array<i32>} : memref<1x2x8x32xf32, #tpu.memory_space<vmem>>, vector<1x2x8x32xf32>,
    return
  }
  func.func @transform_0(%arg0: i32) -> (i32, i32, i32, i32) {
    %c0_i32 = arith.constant 0 : i32
    %c0_i32_0 = arith.constant 0 : i32
    %c0_i32_1 = arith.constant 0 : i32
    %c0_i32_2 = arith.constant 0 : i32
    return %arg0, %c0_i32, %c0_i32_0, %c0_i32_1 : i32, i32, i32, i32
  }
  func.func @transform_1(%arg0: i32) -> (i32, i32, i32) {
    %c0_i32 = arith.constant 0 : i32
    %c0_i32_0 = arith.constant 0 : i32
    %c0_i32_1 = arith.constant 0 : i32
    %c0_i32_2 = arith.constant 0 : i32
    return %c0_i32, %c0_i32_0, %c0_i32_1 : i32, i32, i32
  }
  func.func @transform_2(%arg0: i32) -> (i32, i32, i32) {
    %c0_i32 = arith.constant 0 : i32
    %c0_i32_0 = arith.constant 0 : i32
    %c0_i32_1 = arith.constant 0 : i32
    return %arg0, %c0_i32, %c0_i32_0 : i32, i32, i32
  }
  func.func @transform_3(%arg0: i32) -> (i32, i32, i32) {
    %c0_i32 = arith.constant 0 : i32
    %c0_i32_0 = arith.constant 0 : i32
    %c0_i32_1 = arith.constant 0 : i32
    return %arg0, %c0_i32, %c0_i32_0 : i32, i32, i32
  }
  func.func @transform_4(%arg0: i32) -> (i32, i32, i32) {
    %c0_i32 = arith.constant 0 : i32
    %c0_i32_0 = arith.constant 0 : i32
    %c0_i32_1 = arith.constant 0 : i32
    return %arg0, %c0_i32, %c0_i32_0 : i32, i32, i32
  }
  func.func @transform_5(%arg0: i32) -> (i32, i32, i32) {
    %c0_i32 = arith.constant 0 : i32
    %c0_i32_0 = arith.constant 0 : i32
    %c0_i32_1 = arith.constant 0 : i32
    return %arg0, %c0_i32, %c0_i32_0 : i32, i32, i32
  }
  func.func @transform_6(%arg0: i32) -> (i32, i32, i32) {
    %c0_i32 = arith.constant 0 : i32
    %c0_i32_0 = arith.constant 0 : i32
    %c0_i32_1 = arith.constant 0 : i32
    return %arg0, %c0_i32, %c0_i32_0 : i32, i32, i32
  }
  func.func @transform_7(%arg0: i32) -> (i32, i32, i32) {
    %c0_i32 = arith.constant 0 : i32
    %c0_i32_0 = arith.constant 0 : i32
    %c0_i32_1 = arith.constant 0 : i32
    return %arg0, %c0_i32, %c0_i32_0 : i32, i32, i32
  }
  func.func @transform_8(%arg0: i32) -> (i32, i32, i32) {
    %c0_i32 = arith.constant 0 : i32
    %c0_i32_0 = arith.constant 0 : i32
    %c0_i32_1 = arith.constant 0 : i32
    return %arg0, %c0_i32, %c0_i32_0 : i32, i32, i32
  }
  func.func @transform_9(%arg0: i32) -> (i32, i32, i32) {
    %c0_i32 = arith.constant 0 : i32
    %c0_i32_0 = arith.constant 0 : i32
    %c0_i32_1 = arith.constant 0 : i32
    return %arg0, %c0_i32, %c0_i32_0 : i32, i32, i32
  }
  func.func @transform_10(%arg0: i32) -> (i32, i32, i32) {
    %c0_i32 = arith.constant 0 : i32
    %c0_i32_0 = arith.constant 0 : i32
    %c0_i32_1 = arith.constant 0 : i32
    return %arg0, %c0_i32, %c0_i32_0 : i32, i32, i32
  }
  func.func @transform_11(%arg0: i32) -> (i32, i32, i32) {
    %c0_i32 = arith.constant 0 : i32
    %c0_i32_0 = arith.constant 0 : i32
    %c0_i32_1 = arith.constant 0 : i32
    return %arg0, %c0_i32, %c0_i32_0 : i32, i32, i32
  }
  func.func @transform_12(%arg0: i32) -> (i32, i32, i32, i32) {
    %c0_i32 = arith.constant 0 : i32
    %c0_i32_0 = arith.constant 0 : i32
    %c0_i32_1 = arith.constant 0 : i32
    %c0_i32_2 = arith.constant 0 : i32
    return %arg0, %c0_i32, %c0_i32_0, %c0_i32_1 : i32, i32, i32, i32
  }
}

</mosaic_0001>

<llo_original>
// kernel: inter_modality_attention.1
$region0: #{inter_modality_attention.1}
  #allocation0 [shape = 'u32[]', space=smem, size = 0x4, offset = 0x4, fixed_abs, tag = 'smem constant byte address 0x4 - core index']
  #allocation1 [shape = 'u32[144,128]{1,0:T(1,128)}', space=vmem, size = 0x12000, scoped, tag = 'internal scratch']
  %s0 = inlined_call_operand.vmem [shape: f32[3,2,8,32], index: 0, kind: input, shape index: {}]
  %s1 = inlined_call_operand.vmem [shape: f32[2,8,32], index: 1, kind: input, shape index: {}]
  %s2 = inlined_call_operand.vmem [shape: bf16[3,32,32], index: 2, kind: input, shape index: {}]
  %s3 = inlined_call_operand.vmem [shape: bf16[3,32,32], index: 3, kind: input, shape index: {}]
  %s4 = inlined_call_operand.vmem [shape: bf16[3,32,32], index: 4, kind: input, shape index: {}]
  %s5 = inlined_call_operand.vmem [shape: bf16[3,32,32], index: 5, kind: input, shape index: {}]
  %s6 = inlined_call_operand.vmem [shape: f32[3,1,32], index: 6, kind: input, shape index: {}]
  %s7 = inlined_call_operand.vmem [shape: f32[3,1,32], index: 7, kind: input, shape index: {}]
  %s8 = inlined_call_operand.vmem [shape: f32[3,1,32], index: 8, kind: input, shape index: {}]
  %s9 = inlined_call_operand.vmem [shape: f32[3,1,32], index: 9, kind: input, shape index: {}]
  %s10 = inlined_call_operand.vmem [shape: f32[3,1,32], index: 10, kind: input, shape index: {}]
  %s11 = inlined_call_operand.vmem [shape: f32[3,1,32], index: 11, kind: input, shape index: {}]
  %s12 = inlined_call_operand.vmem [shape: f32[3,2,8,32], index: 12, kind: output, shape index: {}]
  %s13 = sld [smem:[#allocation0]]
  $region81: #{inter_modality_attention.1} parent=0
    _
  %s15 = ssub.s32 1, %s13
  %s16 = scalar_select 0, %s15, %s13
  loop: start=0, step=1, limit=5
  $region2: #{inter_modality_attention.1} parent=0 // loop_pre_header
    _
  $region3: #{inter_modality_attention.1} parent=0 // loop_header
    %s18 = sphi 0, %s22
    %p19 = scmp.ge.s32.totalorder %s18, 5
    %s28 = sphi 0, %s30
    %s31 = sphi 0, %s28
    %s32 = sphi 0, %s31
    %s48 = sphi 0, %s32
    %s52 = sphi 0, %s52
    %s54 = sphi 0, %s52
    %s55 = sphi 0, %s54
    %s69 = sphi 0, %s55
    %s75 = sphi 0, %s77
    %s78 = sphi 0, %s75
    %s79 = sphi 0, %s78
    %s95 = sphi 0, %s79
    %s101 = sphi 0, %s103
    %s104 = sphi 0, %s101
    %s105 = sphi 0, %s104
    %s121 = sphi 0, %s105
    %s127 = sphi 0, %s129
    %s130 = sphi 0, %s127
    %s131 = sphi 0, %s130
    %s147 = sphi 0, %s131
    %s153 = sphi 0, %s155
    %s156 = sphi 0, %s153
    %s157 = sphi 0, %s156
    %s173 = sphi 0, %s157
    %s179 = sphi 0, %s181
    %s182 = sphi 0, %s179
    %s183 = sphi 0, %s182
    %s199 = sphi 0, %s183
    %s205 = sphi 0, %s207
    %s208 = sphi 0, %s205
    %s209 = sphi 0, %s208
    %s225 = sphi 0, %s209
    %s231 = sphi 0, %s233
    %s234 = sphi 0, %s231
    %s235 = sphi 0, %s234
    %s251 = sphi 0, %s235
    %s257 = sphi 0, %s259
    %s260 = sphi 0, %s257
    %s261 = sphi 0, %s260
    %s277 = sphi 0, %s261
    %s283 = sphi 0, %s285
    %s286 = sphi 0, %s283
    %s287 = sphi 0, %s286
    %s303 = sphi 0, %s287
    %s309 = sphi 0, %s311
    %s312 = sphi 0, %s309
    %s313 = sphi 0, %s312
    %s329 = sphi 0, %s313
    %s335 = sphi 0, %s337
    %s338 = sphi 0, %s335
    %s339 = sphi 0, %s338
    %s355 = sphi 0, %s339
  $region4: #{inter_modality_attention.1} parent=0 // loop_header_branch
    %21 = sbr.rel (%p19) target = $region8
  $region5: #{inter_modality_attention.1} parent=0 // loop_body
    %s23 = ssub.s32 %s18, 1
    %s24 = ssub.s32 %s18, 2
    %s25 = sadd.s32 %s18, 1
    %s26 = ssub.s32 %s18, %s25
    %p27 = scmp.eq.s32.totalorder %s26, 0
    %s29 = sadd.s32 %s28, 1
    %s30 = scalar_select %p27, %s28, %s29
    %p33 = pneg %p27
    %p34 = scmp.eq.s32.totalorder %s18, 2
    %p35 = por %p33, %p34
    %p36 = scmp.ne.s32.totalorder %s28, %s31
    %p37 = scmp.eq.s32.totalorder %s18, 0
    %p38 = por %p36, %p37
    %p39 = scmp.ne.s32.totalorder %s28, %s31
    %p40 = scmp.eq.s32.totalorder %s23, 2
    %p41 = por %p39, %p40
    %p42 = scmp.ne.s32.totalorder %s31, %s32
    %p43 = scmp.eq.s32.totalorder %s23, 0
    %p44 = por %p42, %p43
    %p45 = scmp.ne.s32.totalorder %s31, %s32
    %p46 = scmp.eq.s32.totalorder %s24, 2
    %p47 = por %p45, %p46
    %p49 = scmp.ne.s32.totalorder %s32, %s48
    %p50 = scmp.eq.s32.totalorder %s24, 0
    %p51 = por %p49, %p50
    %s53 = sadd.s32 %s52, 1
    %p56 = scmp.eq.s32.totalorder %s18, 2
    %p57 = scmp.ne.s32.totalorder %s52, %s54
    %p58 = scmp.eq.s32.totalorder %s18, 0
    %p59 = por %p57, %p58
    %p60 = scmp.ne.s32.totalorder %s52, %s54
    %p61 = scmp.eq.s32.totalorder %s23, 2
    %p62 = por %p60, %p61
    %p63 = scmp.ne.s32.totalorder %s54, %s55
    %p64 = scmp.eq.s32.totalorder %s23, 0
    %p65 = por %p63, %p64
    %p66 = scmp.ne.s32.totalorder %s54, %s55
    %p67 = scmp.eq.s32.totalorder %s24, 2
    %p68 = por %p66, %p67
    %p70 = scmp.ne.s32.totalorder %s55, %s69
    %p71 = scmp.eq.s32.totalorder %s24, 0
    %p72 = por %p70, %p71
    %s73 = ssub.s32 %s18, %s25
    %p74 = scmp.eq.s32.totalorder %s73, 0
    %s76 = sadd.s32 %s75, 1
    %s77 = scalar_select %p74, %s75, %s76
    %p80 = pneg %p74
    %p81 = scmp.eq.s32.totalorder %s18, 2
    %p82 = por %p80, %p81
    %p83 = scmp.ne.s32.totalorder %s75, %s78
    %p84 = scmp.eq.s32.totalorder %s18, 0
    %p85 = por %p83, %p84
    %p86 = scmp.ne.s32.totalorder %s75, %s78
    %p87 = scmp.eq.s32.totalorder %s23, 2
    %p88 = por %p86, %p87
    %p89 = scmp.ne.s32.totalorder %s78, %s79
    %p90 = scmp.eq.s32.totalorder %s23, 0
    %p91 = por %p89, %p90
    %p92 = scmp.ne.s32.totalorder %s78, %s79
    %p93 = scmp.eq.s32.totalorder %s24, 2
    %p94 = por %p92, %p93
    %p96 = scmp.ne.s32.totalorder %s79, %s95
    %p97 = scmp.eq.s32.totalorder %s24, 0
    %p98 = por %p96, %p97
    %s99 = ssub.s32 %s18, %s25
    %p100 = scmp.eq.s32.totalorder %s99, 0
    %s102 = sadd.s32 %s101, 1
    %s103 = scalar_select %p100, %s101, %s102
    %p106 = pneg %p100
    %p107 = scmp.eq.s32.totalorder %s18, 2
    %p108 = por %p106, %p107
    %p109 = scmp.ne.s32.totalorder %s101, %s104
    %p110 = scmp.eq.s32.totalorder %s18, 0
    %p111 = por %p109, %p110
    %p112 = scmp.ne.s32.totalorder %s101, %s104
    %p113 = scmp.eq.s32.totalorder %s23, 2
    %p114 = por %p112, %p113
    %p115 = scmp.ne.s32.totalorder %s104, %s105
    %p116 = scmp.eq.s32.totalorder %s23, 0
    %p117 = por %p115, %p116
    %p118 = scmp.ne.s32.totalorder %s104, %s105
    %p119 = scmp.eq.s32.totalorder %s24, 2
    %p120 = por %p118, %p119
    %p122 = scmp.ne.s32.totalorder %s105, %s121
    %p123 = scmp.eq.s32.totalorder %s24, 0
    %p124 = por %p122, %p123
    %s125 = ssub.s32 %s18, %s25
    %p126 = scmp.eq.s32.totalorder %s125, 0
    %s128 = sadd.s32 %s127, 1
    %s129 = scalar_select %p126, %s127, %s128
    %p132 = pneg %p126
    %p133 = scmp.eq.s32.totalorder %s18, 2
    %p134 = por %p132, %p133
    %p135 = scmp.ne.s32.totalorder %s127, %s130
    %p136 = scmp.eq.s32.totalorder %s18, 0
    %p137 = por %p135, %p136
    %p138 = scmp.ne.s32.totalorder %s127, %s130
    %p139 = scmp.eq.s32.totalorder %s23, 2
    %p140 = por %p138, %p139
    %p141 = scmp.ne.s32.totalorder %s130, %s131
    %p142 = scmp.eq.s32.totalorder %s23, 0
    %p143 = por %p141, %p142
    %p144 = scmp.ne.s32.totalorder %s130, %s131
    %p145 = scmp.eq.s32.totalorder %s24, 2
    %p146 = por %p144, %p145
    %p148 = scmp.ne.s32.totalorder %s131, %s147
    %p149 = scmp.eq.s32.totalorder %s24, 0
    %p150 = por %p148, %p149
    %s151 = ssub.s32 %s18, %s25
    %p152 = scmp.eq.s32.totalorder %s151, 0
    %s154 = sadd.s32 %s153, 1
    %s155 = scalar_select %p152, %s153, %s154
    %p158 = pneg %p152
    %p159 = scmp.eq.s32.totalorder %s18, 2
    %p160 = por %p158, %p159
    %p161 = scmp.ne.s32.totalorder %s153, %s156
    %p162 = scmp.eq.s32.totalorder %s18, 0
    %p163 = por %p161, %p162
    %p164 = scmp.ne.s32.totalorder %s153, %s156
    %p165 = scmp.eq.s32.totalorder %s23, 2
    %p166 = por %p164, %p165
    %p167 = scmp.ne.s32.totalorder %s156, %s157
    %p168 = scmp.eq.s32.totalorder %s23, 0
    %p169 = por %p167, %p168
    %p170 = scmp.ne.s32.totalorder %s156, %s157
    %p171 = scmp.eq.s32.totalorder %s24, 2
    %p172 = por %p170, %p171
    %p174 = scmp.ne.s32.totalorder %s157, %s173
    %p175 = scmp.eq.s32.totalorder %s24, 0
    %p176 = por %p174, %p175
    %s177 = ssub.s32 %s18, %s25
    %p178 = scmp.eq.s32.totalorder %s177, 0
    %s180 = sadd.s32 %s179, 1
    %s181 = scalar_select %p178, %s179, %s180
    %p184 = pneg %p178
    %p185 = scmp.eq.s32.totalorder %s18, 2
    %p186 = por %p184, %p185
    %p187 = scmp.ne.s32.totalorder %s179, %s182
    %p188 = scmp.eq.s32.totalorder %s18, 0
    %p189 = por %p187, %p188
    %p190 = scmp.ne.s32.totalorder %s179, %s182
    %p191 = scmp.eq.s32.totalorder %s23, 2
    %p192 = por %p190, %p191
    %p193 = scmp.ne.s32.totalorder %s182, %s183
    %p194 = scmp.eq.s32.totalorder %s23, 0
    %p195 = por %p193, %p194
    %p196 = scmp.ne.s32.totalorder %s182, %s183
    %p197 = scmp.eq.s32.totalorder %s24, 2
    %p198 = por %p196, %p197
    %p200 = scmp.ne.s32.totalorder %s183, %s199
    %p201 = scmp.eq.s32.totalorder %s24, 0
    %p202 = por %p200, %p201
    %s203 = ssub.s32 %s18, %s25
    %p204 = scmp.eq.s32.totalorder %s203, 0
    %s206 = sadd.s32 %s205, 1
    %s207 = scalar_select %p204, %s205, %s206
    %p210 = pneg %p204
    %p211 = scmp.eq.s32.totalorder %s18, 2
    %p212 = por %p210, %p211
    %p213 = scmp.ne.s32.totalorder %s205, %s208
    %p214 = scmp.eq.s32.totalorder %s18, 0
    %p215 = por %p213, %p214
    %p216 = scmp.ne.s32.totalorder %s205, %s208
    %p217 = scmp.eq.s32.totalorder %s23, 2
    %p218 = por %p216, %p217
    %p219 = scmp.ne.s32.totalorder %s208, %s209
    %p220 = scmp.eq.s32.totalorder %s23, 0
    %p221 = por %p219, %p220
    %p222 = scmp.ne.s32.totalorder %s208, %s209
    %p223 = scmp.eq.s32.totalorder %s24, 2
    %p224 = por %p222, %p223
    %p226 = scmp.ne.s32.totalorder %s209, %s225
    %p227 = scmp.eq.s32.totalorder %s24, 0
    %p228 = por %p226, %p227
    %s229 = ssub.s32 %s18, %s25
    %p230 = scmp.eq.s32.totalorder %s229, 0
    %s232 = sadd.s32 %s231, 1
    %s233 = scalar_select %p230, %s231, %s232
    %p236 = pneg %p230
    %p237 = scmp.eq.s32.totalorder %s18, 2
    %p238 = por %p236, %p237
    %p239 = scmp.ne.s32.totalorder %s231, %s234
    %p240 = scmp.eq.s32.totalorder %s18, 0
    %p241 = por %p239, %p240
    %p242 = scmp.ne.s32.totalorder %s231, %s234
    %p243 = scmp.eq.s32.totalorder %s23, 2
    %p244 = por %p242, %p243
    %p245 = scmp.ne.s32.totalorder %s234, %s235
    %p246 = scmp.eq.s32.totalorder %s23, 0
    %p247 = por %p245, %p246
    %p248 = scmp.ne.s32.totalorder %s234, %s235
    %p249 = scmp.eq.s32.totalorder %s24, 2
    %p250 = por %p248, %p249
    %p252 = scmp.ne.s32.totalorder %s235, %s251
    %p253 = scmp.eq.s32.totalorder %s24, 0
    %p254 = por %p252, %p253
    %s255 = ssub.s32 %s18, %s25
    %p256 = scmp.eq.s32.totalorder %s255, 0
    %s258 = sadd.s32 %s257, 1
    %s259 = scalar_select %p256, %s257, %s258
    %p262 = pneg %p256
    %p263 = scmp.eq.s32.totalorder %s18, 2
    %p264 = por %p262, %p263
    %p265 = scmp.ne.s32.totalorder %s257, %s260
    %p266 = scmp.eq.s32.totalorder %s18, 0
    %p267 = por %p265, %p266
    %p268 = scmp.ne.s32.totalorder %s257, %s260
    %p269 = scmp.eq.s32.totalorder %s23, 2
    %p270 = por %p268, %p269
    %p271 = scmp.ne.s32.totalorder %s260, %s261
    %p272 = scmp.eq.s32.totalorder %s23, 0
    %p273 = por %p271, %p272
    %p274 = scmp.ne.s32.totalorder %s260, %s261
    %p275 = scmp.eq.s32.totalorder %s24, 2
    %p276 = por %p274, %p275
    %p278 = scmp.ne.s32.totalorder %s261, %s277
    %p279 = scmp.eq.s32.totalorder %s24, 0
    %p280 = por %p278, %p279
    %s281 = ssub.s32 %s18, %s25
    %p282 = scmp.eq.s32.totalorder %s281, 0
    %s284 = sadd.s32 %s283, 1
    %s285 = scalar_select %p282, %s283, %s284
    %p288 = pneg %p282
    %p289 = scmp.eq.s32.totalorder %s18, 2
    %p290 = por %p288, %p289
    %p291 = scmp.ne.s32.totalorder %s283, %s286
    %p292 = scmp.eq.s32.totalorder %s18, 0
    %p293 = por %p291, %p292
    %p294 = scmp.ne.s32.totalorder %s283, %s286
    %p295 = scmp.eq.s32.totalorder %s23, 2
    %p296 = por %p294, %p295
    %p297 = scmp.ne.s32.totalorder %s286, %s287
    %p298 = scmp.eq.s32.totalorder %s23, 0
    %p299 = por %p297, %p298
    %p300 = scmp.ne.s32.totalorder %s286, %s287
    %p301 = scmp.eq.s32.totalorder %s24, 2
    %p302 = por %p300, %p301
    %p304 = scmp.ne.s32.totalorder %s287, %s303
    %p305 = scmp.eq.s32.totalorder %s24, 0
    %p306 = por %p304, %p305
    %s307 = ssub.s32 %s18, %s25
    %p308 = scmp.eq.s32.totalorder %s307, 0
    %s310 = sadd.s32 %s309, 1
    %s311 = scalar_select %p308, %s309, %s310
    %p314 = pneg %p308
    %p315 = scmp.eq.s32.totalorder %s18, 2
    %p316 = por %p314, %p315
    %p317 = scmp.ne.s32.totalorder %s309, %s312
    %p318 = scmp.eq.s32.totalorder %s18, 0
    %p319 = por %p317, %p318
    %p320 = scmp.ne.s32.totalorder %s309, %s312
    %p321 = scmp.eq.s32.totalorder %s23, 2
    %p322 = por %p320, %p321
    %p323 = scmp.ne.s32.totalorder %s312, %s313
    %p324 = scmp.eq.s32.totalorder %s23, 0
    %p325 = por %p323, %p324
    %p326 = scmp.ne.s32.totalorder %s312, %s313
    %p327 = scmp.eq.s32.totalorder %s24, 2
    %p328 = por %p326, %p327
    %p330 = scmp.ne.s32.totalorder %s313, %s329
    %p331 = scmp.eq.s32.totalorder %s24, 0
    %p332 = por %p330, %p331
    %s333 = ssub.s32 %s18, %s25
    %p334 = scmp.eq.s32.totalorder %s333, 0
    %s336 = sadd.s32 %s335, 1
    %s337 = scalar_select %p334, %s335, %s336
    %p340 = pneg %p334
    %p341 = scmp.eq.s32.totalorder %s18, 2
    %p342 = por %p340, %p341
    %p343 = scmp.ne.s32.totalorder %s335, %s338
    %p344 = scmp.eq.s32.totalorder %s18, 0
    %p345 = por %p343, %p344
    %p346 = scmp.ne.s32.totalorder %s335, %s338
    %p347 = scmp.eq.s32.totalorder %s23, 2
    %p348 = por %p346, %p347
    %p349 = scmp.ne.s32.totalorder %s338, %s339
    %p350 = scmp.eq.s32.totalorder %s23, 0
    %p351 = por %p349, %p350
    %p352 = scmp.ne.s32.totalorder %s338, %s339
    %p353 = scmp.eq.s32.totalorder %s24, 2
    %p354 = por %p352, %p353
    %p356 = scmp.ne.s32.totalorder %s339, %s355
    %p357 = scmp.eq.s32.totalorder %s24, 0
    %p358 = por %p356, %p357
    %p359 = scmp.le.s32.totalorder 1, %s18
    %p360 = scmp.lt.s32.totalorder %s18, 4
    %p361 = pnand %p359, %p360
    %p362 = pneg %p361
    // Predicated region
    $region9: #{inter_modality_attention.1} parent=5 // pred_check
      _
    $region10: #{inter_modality_attention.1} parent=5 // pred_check_branch
      %364 = sbr.rel (%p361) target = $region12
    $region11: #{inter_modality_attention.1} parent=5 // pred_region
      %s365 = ssub.s32 %s18, 1
      // Predicated region
      $region13: #{inter_modality_attention.1} parent=11 // pred_check
        %p366 = pneg %p65
      $region14: #{inter_modality_attention.1} parent=11 // pred_check_branch
        %368 = sbr.rel (%p366) target = $region16
      $region15: #{inter_modality_attention.1} parent=11 // pred_region
        _
      $region16: #{inter_modality_attention.1} parent=11 // pred_fallthru
        _
    $region12: #{inter_modality_attention.1} parent=5 // pred_fallthru
      _
    %p369 = scmp.lt.s32.totalorder %s18, 3
    // Predicated region
    $region17: #{inter_modality_attention.1} parent=5 // pred_check
      %p370 = pneg %p369
    $region18: #{inter_modality_attention.1} parent=5 // pred_check_branch
      %372 = sbr.rel (%p370) target = $region20
    $region19: #{inter_modality_attention.1} parent=5 // pred_region
      // Predicated region
      $region21: #{inter_modality_attention.1} parent=19 // pred_check
        %p373 = pneg %p38
      $region22: #{inter_modality_attention.1} parent=19 // pred_check_branch
        %375 = sbr.rel (%p373) target = $region24
      $region23: #{inter_modality_attention.1} parent=19 // pred_region
        %p376 = scmp.lt.s32.totalorder %s18, 2
        %s377 = scalar_select %p376, %s18, 2
        %s378 = smul.addr %s377, 2
        %s379 = smul.addr %s378, 8
        %s380 = scalar_lea.vmem %s0, %s379
      $region24: #{inter_modality_attention.1} parent=19 // pred_fallthru
        _
      // Predicated region
      $region25: #{inter_modality_attention.1} parent=19 // pred_check
        %p381 = pneg %p85
      $region26: #{inter_modality_attention.1} parent=19 // pred_check_branch
        %383 = sbr.rel (%p381) target = $region28
      $region27: #{inter_modality_attention.1} parent=19 // pred_region
        %p384 = scmp.lt.s32.totalorder %s18, 2
        %s385 = scalar_select %p384, %s18, 2
        %s386 = smul.addr %s385, 4
        %s387 = smul.addr %s386, 4
        %s388 = scalar_lea.vmem %s2, %s387
      $region28: #{inter_modality_attention.1} parent=19 // pred_fallthru
        _
      // Predicated region
      $region29: #{inter_modality_attention.1} parent=19 // pred_check
        %p389 = pneg %p111
      $region30: #{inter_modality_attention.1} parent=19 // pred_check_branch
        %391 = sbr.rel (%p389) target = $region32
      $region31: #{inter_modality_attention.1} parent=19 // pred_region
        %p392 = scmp.lt.s32.totalorder %s18, 2
        %s393 = scalar_select %p392, %s18, 2
        %s394 = smul.addr %s393, 4
        %s395 = smul.addr %s394, 4
        %s396 = scalar_lea.vmem %s3, %s395
      $region32: #{inter_modality_attention.1} parent=19 // pred_fallthru
        _
      // Predicated region
      $region33: #{inter_modality_attention.1} parent=19 // pred_check
        %p397 = pneg %p137
      $region34: #{inter_modality_attention.1} parent=19 // pred_check_branch
        %399 = sbr.rel (%p397) target = $region36
      $region35: #{inter_modality_attention.1} parent=19 // pred_region
        %p400 = scmp.lt.s32.totalorder %s18, 2
        %s401 = scalar_select %p400, %s18, 2
        %s402 = smul.addr %s401, 4
        %s403 = smul.addr %s402, 4
        %s404 = scalar_lea.vmem %s4, %s403
      $region36: #{inter_modality_attention.1} parent=19 // pred_fallthru
        _
      // Predicated region
      $region37: #{inter_modality_attention.1} parent=19 // pred_check
        %p405 = pneg %p163
      $region38: #{inter_modality_attention.1} parent=19 // pred_check_branch
        %407 = sbr.rel (%p405) target = $region40
      $region39: #{inter_modality_attention.1} parent=19 // pred_region
        %p408 = scmp.lt.s32.totalorder %s18, 2
        %s409 = scalar_select %p408, %s18, 2
        %s410 = smul.addr %s409, 4
        %s411 = smul.addr %s410, 4
        %s412 = scalar_lea.vmem %s5, %s411
      $region40: #{inter_modality_attention.1} parent=19 // pred_fallthru
        _
      // Predicated region
      $region41: #{inter_modality_attention.1} parent=19 // pred_check
        %p413 = pneg %p189
      $region42: #{inter_modality_attention.1} parent=19 // pred_check_branch
        %415 = sbr.rel (%p413) target = $region44
      $region43: #{inter_modality_attention.1} parent=19 // pred_region
        %p416 = scmp.lt.s32.totalorder %s18, 2
        %s417 = scalar_select %p416, %s18, 2
        %s418 = scalar_lea.vmem %s6, %s417
      $region44: #{inter_modality_attention.1} parent=19 // pred_fallthru
        _
      // Predicated region
      $region45: #{inter_modality_attention.1} parent=19 // pred_check
        %p419 = pneg %p215
      $region46: #{inter_modality_attention.1} parent=19 // pred_check_branch
        %421 = sbr.rel (%p419) target = $region48
      $region47: #{inter_modality_attention.1} parent=19 // pred_region
        %p422 = scmp.lt.s32.totalorder %s18, 2
        %s423 = scalar_select %p422, %s18, 2
        %s424 = scalar_lea.vmem %s7, %s423
      $region48: #{inter_modality_attention.1} parent=19 // pred_fallthru
        _
      // Predicated region
      $region49: #{inter_modality_attention.1} parent=19 // pred_check
        %p425 = pneg %p241
      $region50: #{inter_modality_attention.1} parent=19 // pred_check_branch
        %427 = sbr.rel (%p425) target = $region52
      $region51: #{inter_modality_attention.1} parent=19 // pred_region
        %p428 = scmp.lt.s32.totalorder %s18, 2
        %s429 = scalar_select %p428, %s18, 2
        %s430 = scalar_lea.vmem %s8, %s429
      $region52: #{inter_modality_attention.1} parent=19 // pred_fallthru
        _
      // Predicated region
      $region53: #{inter_modality_attention.1} parent=19 // pred_check
        %p431 = pneg %p267
      $region54: #{inter_modality_attention.1} parent=19 // pred_check_branch
        %433 = sbr.rel (%p431) target = $region56
      $region55: #{inter_modality_attention.1} parent=19 // pred_region
        %p434 = scmp.lt.s32.totalorder %s18, 2
        %s435 = scalar_select %p434, %s18, 2
        %s436 = scalar_lea.vmem %s9, %s435
      $region56: #{inter_modality_attention.1} parent=19 // pred_fallthru
        _
      // Predicated region
      $region57: #{inter_modality_attention.1} parent=19 // pred_check
        %p437 = pneg %p293
      $region58: #{inter_modality_attention.1} parent=19 // pred_check_branch
        %439 = sbr.rel (%p437) target = $region60
      $region59: #{inter_modality_attention.1} parent=19 // pred_region
        %p440 = scmp.lt.s32.totalorder %s18, 2
        %s441 = scalar_select %p440, %s18, 2
        %s442 = scalar_lea.vmem %s10, %s441
      $region60: #{inter_modality_attention.1} parent=19 // pred_fallthru
        _
      // Predicated region
      $region61: #{inter_modality_attention.1} parent=19 // pred_check
        %p443 = pneg %p319
      $region62: #{inter_modality_attention.1} parent=19 // pred_check_branch
        %445 = sbr.rel (%p443) target = $region64
      $region63: #{inter_modality_attention.1} parent=19 // pred_region
        %p446 = scmp.lt.s32.totalorder %s18, 2
        %s447 = scalar_select %p446, %s18, 2
        %s448 = scalar_lea.vmem %s11, %s447
      $region64: #{inter_modality_attention.1} parent=19 // pred_fallthru
        _
    $region20: #{inter_modality_attention.1} parent=5 // pred_fallthru
      _
    %p449 = scmp.le.s32.totalorder 1, %s18
    %p450 = scmp.lt.s32.totalorder %s18, 4
    %p451 = pnand %p449, %p450
    %p452 = pneg %p451
    // Predicated region
    $region65: #{inter_modality_attention.1} parent=5 // pred_check
      _
    $region66: #{inter_modality_attention.1} parent=5 // pred_check_branch
      %454 = sbr.rel (%p451) target = $region68
    $region67: #{inter_modality_attention.1} parent=5 // pred_region
      %s455 = ssub.s32 %s18, 1
      %p456 = scmp.lt.s32.totalorder %s23, 2
      %s457 = scalar_select %p456, %s23, 2
      %s458 = smul.addr %s457, 2
      %s459 = smul.addr %s458, 8
      %s460 = scalar_lea.vmem %s0, %s459
      %p461 = pneg %p44
      %p462 = pneg %p41
      %p463 = pneg %p65
      %p464 = pneg %p62
      %p465 = scmp.lt.s32.totalorder %s23, 2
      %s466 = scalar_select %p465, %s23, 2
      %s467 = smul.addr %s466, 4
      %s468 = smul.addr %s467, 4
      %s469 = scalar_lea.vmem %s2, %s468
      %p470 = pneg %p91
      %p471 = pneg %p88
      %p472 = scmp.lt.s32.totalorder %s23, 2
      %s473 = scalar_select %p472, %s23, 2
      %s474 = smul.addr %s473, 4
      %s475 = smul.addr %s474, 4
      %s476 = scalar_lea.vmem %s3, %s475
      %p477 = pneg %p117
      %p478 = pneg %p114
      %p479 = scmp.lt.s32.totalorder %s23, 2
      %s480 = scalar_select %p479, %s23, 2
      %s481 = smul.addr %s480, 4
      %s482 = smul.addr %s481, 4
      %s483 = scalar_lea.vmem %s4, %s482
      %p484 = pneg %p143
      %p485 = pneg %p140
      %p486 = scmp.lt.s32.totalorder %s23, 2
      %s487 = scalar_select %p486, %s23, 2
      %s488 = smul.addr %s487, 4
      %s489 = smul.addr %s488, 4
      %s490 = scalar_lea.vmem %s5, %s489
      %p491 = pneg %p169
      %p492 = pneg %p166
      %p493 = scmp.lt.s32.totalorder %s23, 2
      %s494 = scalar_select %p493, %s23, 2
      %s495 = scalar_lea.vmem %s6, %s494
      %p496 = pneg %p195
      %p497 = pneg %p192
      %p498 = scmp.lt.s32.totalorder %s23, 2
      %s499 = scalar_select %p498, %s23, 2
      %s500 = scalar_lea.vmem %s7, %s499
      %p501 = pneg %p221
      %p502 = pneg %p218
      %p503 = scmp.lt.s32.totalorder %s23, 2
      %s504 = scalar_select %p503, %s23, 2
      %s505 = scalar_lea.vmem %s8, %s504
      %p506 = pneg %p247
      %p507 = pneg %p244
      %p508 = scmp.lt.s32.totalorder %s23, 2
      %s509 = scalar_select %p508, %s23, 2
      %s510 = scalar_lea.vmem %s9, %s509
      %p511 = pneg %p273
      %p512 = pneg %p270
      %p513 = scmp.lt.s32.totalorder %s23, 2
      %s514 = scalar_select %p513, %s23, 2
      %s515 = scalar_lea.vmem %s10, %s514
      %p516 = pneg %p299
      %p517 = pneg %p296
      %p518 = scmp.lt.s32.totalorder %s23, 2
      %s519 = scalar_select %p518, %s23, 2
      %s520 = scalar_lea.vmem %s11, %s519
      %p521 = pneg %p325
      %p522 = pneg %p322
      %p523 = pneg %p351
      %p524 = pneg %p348
      %p525 = scmp.lt.s32.totalorder %s23, 2
      %s526 = scalar_select %p525, %s23, 2
      %s527 = smul.addr %s526, 2
      %s528 = smul.addr %s527, 8
      %s529 = scalar_lea.vmem %s12, %s528
      %p530 = scmp.lt.s32.totalorder %s23, 2
      %s531 = scalar_select %p530, %s23, 2
      %s532 = smul.addr %s531, 2
      %s533 = smul.addr %s532, 8
      %s534 = scalar_lea.vmem %s0, %s533
      %p535 = scmp.lt.s32.totalorder %s23, 2
      %s536 = scalar_select %p535, %s23, 2
      %s537 = smul.addr %s536, 4
      %s538 = smul.addr %s537, 4
      %s539 = scalar_lea.vmem %s2, %s538
      %p540 = scmp.lt.s32.totalorder %s23, 2
      %s541 = scalar_select %p540, %s23, 2
      %s542 = smul.addr %s541, 4
      %s543 = smul.addr %s542, 4
      %s544 = scalar_lea.vmem %s3, %s543
      %p545 = scmp.lt.s32.totalorder %s23, 2
      %s546 = scalar_select %p545, %s23, 2
      %s547 = smul.addr %s546, 4
      %s548 = smul.addr %s547, 4
      %s549 = scalar_lea.vmem %s4, %s548
      %p550 = scmp.lt.s32.totalorder %s23, 2
      %s551 = scalar_select %p550, %s23, 2
      %s552 = smul.addr %s551, 4
      %s553 = smul.addr %s552, 4
      %s554 = scalar_lea.vmem %s5, %s553
      %p555 = scmp.lt.s32.totalorder %s23, 2
      %s556 = scalar_select %p555, %s23, 2
      %s557 = scalar_lea.vmem %s6, %s556
      %p558 = scmp.lt.s32.totalorder %s23, 2
      %s559 = scalar_select %p558, %s23, 2
      %s560 = scalar_lea.vmem %s7, %s559
      %p561 = scmp.lt.s32.totalorder %s23, 2
      %s562 = scalar_select %p561, %s23, 2
      %s563 = scalar_lea.vmem %s8, %s562
      %p564 = scmp.lt.s32.totalorder %s23, 2
      %s565 = scalar_select %p564, %s23, 2
      %s566 = scalar_lea.vmem %s9, %s565
      %p567 = scmp.lt.s32.totalorder %s23, 2
      %s568 = scalar_select %p567, %s23, 2
      %s569 = scalar_lea.vmem %s10, %s568
      %p570 = scmp.lt.s32.totalorder %s23, 2
      %s571 = scalar_select %p570, %s23, 2
      %s572 = scalar_lea.vmem %s11, %s571
      %p573 = scmp.lt.s32.totalorder %s23, 2
      %s574 = scalar_select %p573, %s23, 2
      %s575 = smul.addr %s574, 2
      %s576 = smul.addr %s575, 8
      %s577 = scalar_lea.vmem %s12, %s576
      %v579 = vld [vmem:[%s534] sm:$0xff]
      %v580 = vld [vmem:[%s534 + $0x8] sm:$0xff]
      %v581 = vld [vmem:[%s1] sm:$0xff]
      %v582 = vld [vmem:[%s1 + $0x8] sm:$0xff]
      %v583 = vsub.f32 %v581, %v579
      %v584 = vsub.f32 %v582, %v580
      %v585 = vpack.c.bf16 %v580, %v579
      %v586 = vpack.c.bf16 %v584, %v583
      %v587 = vld [vmem:[%s539] sm:$0xf]
      %v588 = vld [vmem:[%s539 + $0x4] sm:$0xf]
      %v589 = vld [vmem:[%s539 + $0x8] sm:$0xf]
      %v590 = vld [vmem:[%s539 + $0xc] sm:$0xf]
      %v591 = vld [vmem:[%s544] sm:$0xf]
      %v592 = vld [vmem:[%s544 + $0x4] sm:$0xf]
      %v593 = vld [vmem:[%s544 + $0x8] sm:$0xf]
      %v594 = vld [vmem:[%s544 + $0xc] sm:$0xf]
      %v595 = vld [vmem:[%s549] sm:$0xf]
      %v596 = vld [vmem:[%s549 + $0x4] sm:$0xf]
      %v597 = vld [vmem:[%s549 + $0x8] sm:$0xf]
      %v598 = vld [vmem:[%s549 + $0xc] sm:$0xf]
      %v599 = vld [vmem:[%s554] sm:$0xf]
      %v600 = vld [vmem:[%s554 + $0x4] sm:$0xf]
      %v601 = vld [vmem:[%s554 + $0x8] sm:$0xf]
      %v602 = vld [vmem:[%s554 + $0xc] sm:$0xf]
      %v603 = vld [vmem:[%s557] sm:$0x1]
      %v604 = vld [vmem:[%s560] sm:$0x1]
      %v605 = vld [vmem:[%s563] sm:$0x1]
      %v606 = vld [vmem:[%s566] sm:$0x1]
      %v608 = vlaneseq
      %v609 = vshrl.u32 %v608, 7
      %v610 = vsub.s32 0, %v609
      %v611 = vrot.slane %v603, %v610
      %v617 = vunpack.c.l.b16 %v587
      %v618 = vunpack.c.l.b16 %v588
      %v619 = vunpack.c.l.b16 %v589
      %v620 = vunpack.c.l.b16 %v590
      %v621 = vpack.c.b16 %v618, %v617
      %v622 = vpack.c.b16 %v620, %v619
      %vm625 = vcmask 261120
      %v627 = vsel %vm625, %v585, 0
      %629 = vmatprep.subr.bf16.mxu0 0
      %630 = vmatpush1.bf16.msra.mxu0 %v621
      %631 = vmatprep.subr.bf16.mxu0 0
      %632 = vmatpush1.bf16.msra.mxu0 %v622
      %633 = vmatprep.subr.bf16.mxu0 0
      %634 = vmatpush1.bf16.msra.mxu0 0
      %635 = vmatprep.subr.bf16.mxu0 0
      %636 = vmatpush1.bf16.msra.mxu0 0
      %637 = vmatprep.subr.bf16.mxu0 0
      %638 = vmatpush1.bf16.msra.mxu0 0
      %639 = vmatprep.subr.bf16.mxu0 0
      %640 = vmatpush1.bf16.msra.mxu0 0
      %641 = vmatprep.subr.bf16.mxu0 0
      %642 = vmatpush1.bf16.msra.mxu0 0
      %643 = vmatprep.subr.bf16.mxu0 0
      %644 = vmatpush1.bf16.msra.mxu0 0
      %645 = vmatprep.subr.bf16.mxu0 0
      %646 = vmatpush1.bf16.msra.mxu0 0
      %647 = vmatprep.subr.bf16.mxu0 0
      %648 = vmatpush1.bf16.msra.mxu0 0
      %649 = vmatprep.subr.bf16.mxu0 0
      %650 = vmatpush1.bf16.msra.mxu0 0
      %651 = vmatprep.subr.bf16.mxu0 0
      %652 = vmatpush1.bf16.msra.mxu0 0
      %653 = vmatprep.subr.bf16.mxu0 0
      %654 = vmatpush1.bf16.msra.mxu0 0
      %655 = vmatprep.subr.bf16.mxu0 0
      %656 = vmatpush1.bf16.msra.mxu0 0
      %657 = vmatprep.subr.bf16.mxu0 0
      %658 = vmatpush1.bf16.msra.mxu0 0
      %659 = vmatprep.subr.bf16.mxu0 0
      %660 = vmatpush1.bf16.msra.mxu0 0
      %661 = vmatprep.mubr.bf16.mxu0 0
      %662 = vmatmul.mubr.bf16.gmra.mrb[0].mxu0 %v627
      %v663 = vpop.f32.mrb[0].mxu0
      %v664 = vadd.f32 %v611, %v663
      %v665 = vpop.f32.mrb[0].mxu0
      %v666 = vpop.f32.mrb[0].mxu0
      %v667 = vadd.f32 %v611, %v666
      %v668 = vpop.f32.mrb[0].mxu0
      %669 = vdwg.mxu0
      %v671 = vlaneseq
      %v672 = vshrl.u32 %v671, 7
      %v673 = vsub.s32 0, %v672
      %v674 = vrot.slane %v604, %v673
      %v680 = vunpack.c.l.b16 %v591
      %v681 = vunpack.c.l.b16 %v592
      %v682 = vunpack.c.l.b16 %v593
      %v683 = vunpack.c.l.b16 %v594
      %v684 = vpack.c.b16 %v681, %v680
      %v685 = vpack.c.b16 %v683, %v682
      %v689 = vsel %vm625, %v586, 0
      %691 = vmatprep.subr.bf16.mxu0 0
      %692 = vmatpush1.bf16.msra.mxu0 %v684
      %693 = vmatprep.subr.bf16.mxu0 0
      %694 = vmatpush1.bf16.msra.mxu0 %v685
      %695 = vmatprep.subr.bf16.mxu0 0
      %696 = vmatpush1.bf16.msra.mxu0 0
      %697 = vmatprep.subr.bf16.mxu0 0
      %698 = vmatpush1.bf16.msra.mxu0 0
      %699 = vmatprep.subr.bf16.mxu0 0
      %700 = vmatpush1.bf16.msra.mxu0 0
      %701 = vmatprep.subr.bf16.mxu0 0
      %702 = vmatpush1.bf16.msra.mxu0 0
      %703 = vmatprep.subr.bf16.mxu0 0
      %704 = vmatpush1.bf16.msra.mxu0 0
      %705 = vmatprep.subr.bf16.mxu0 0
      %706 = vmatpush1.bf16.msra.mxu0 0
      %707 = vmatprep.subr.bf16.mxu0 0
      %708 = vmatpush1.bf16.msra.mxu0 0
      %709 = vmatprep.subr.bf16.mxu0 0
      %710 = vmatpush1.bf16.msra.mxu0 0
      %711 = vmatprep.subr.bf16.mxu0 0
      %712 = vmatpush1.bf16.msra.mxu0 0
      %713 = vmatprep.subr.bf16.mxu0 0
      %714 = vmatpush1.bf16.msra.mxu0 0
      %715 = vmatprep.subr.bf16.mxu0 0
      %716 = vmatpush1.bf16.msra.mxu0 0
      %717 = vmatprep.subr.bf16.mxu0 0
      %718 = vmatpush1.bf16.msra.mxu0 0
      %719 = vmatprep.subr.bf16.mxu0 0
      %720 = vmatpush1.bf16.msra.mxu0 0
      %721 = vmatprep.subr.bf16.mxu0 0
      %722 = vmatpush1.bf16.msra.mxu0 0
      %723 = vmatprep.mubr.bf16.mxu0 0
      %724 = vmatmul.mubr.bf16.gmra.mrb[0].mxu0 %v689
      %v725 = vpop.f32.mrb[0].mxu0
      %v726 = vadd.f32 %v674, %v725
      %v727 = vpop.f32.mrb[0].mxu0
      %v728 = vpop.f32.mrb[0].mxu0
      %v729 = vadd.f32 %v674, %v728
      %v730 = vpop.f32.mrb[0].mxu0
      %731 = vdwg.mxu0
      %v733 = vlaneseq
      %v734 = vshrl.u32 %v733, 7
      %v735 = vsub.s32 0, %v734
      %v736 = vrot.slane %v605, %v735
      %v742 = vunpack.c.l.b16 %v595
      %v743 = vunpack.c.l.b16 %v596
      %v744 = vunpack.c.l.b16 %v597
      %v745 = vunpack.c.l.b16 %v598
      %v746 = vpack.c.b16 %v743, %v742
      %v747 = vpack.c.b16 %v745, %v744
      %750 = vmatprep.subr.bf16.mxu0 0
      %751 = vmatpush1.bf16.msra.mxu0 %v746
      %752 = vmatprep.subr.bf16.mxu0 0
      %753 = vmatpush1.bf16.msra.mxu0 %v747
      %754 = vmatprep.subr.bf16.mxu0 0
      %755 = vmatpush1.bf16.msra.mxu0 0
      %756 = vmatprep.subr.bf16.mxu0 0
      %757 = vmatpush1.bf16.msra.mxu0 0
      %758 = vmatprep.subr.bf16.mxu0 0
      %759 = vmatpush1.bf16.msra.mxu0 0
      %760 = vmatprep.subr.bf16.mxu0 0
      %761 = vmatpush1.bf16.msra.mxu0 0
      %762 = vmatprep.subr.bf16.mxu0 0
      %763 = vmatpush1.bf16.msra.mxu0 0
      %764 = vmatprep.subr.bf16.mxu0 0
      %765 = vmatpush1.bf16.msra.mxu0 0
      %766 = vmatprep.subr.bf16.mxu0 0
      %767 = vmatpush1.bf16.msra.mxu0 0
      %768 = vmatprep.subr.bf16.mxu0 0
      %769 = vmatpush1.bf16.msra.mxu0 0
      %770 = vmatprep.subr.bf16.mxu0 0
      %771 = vmatpush1.bf16.msra.mxu0 0
      %772 = vmatprep.subr.bf16.mxu0 0
      %773 = vmatpush1.bf16.msra.mxu0 0
      %774 = vmatprep.subr.bf16.mxu0 0
      %775 = vmatpush1.bf16.msra.mxu0 0
      %776 = vmatprep.subr.bf16.mxu0 0
      %777 = vmatpush1.bf16.msra.mxu0 0
      %778 = vmatprep.subr.bf16.mxu0 0
      %779 = vmatpush1.bf16.msra.mxu0 0
      %780 = vmatprep.subr.bf16.mxu0 0
      %781 = vmatpush1.bf16.msra.mxu0 0
      %782 = vmatprep.mubr.bf16.mxu0 0
      %783 = vmatmul.mubr.bf16.gmra.mrb[0].mxu0 %v689
      %v784 = vpop.f32.mrb[0].mxu0
      %v785 = vadd.f32 %v736, %v784
      %v786 = vpop.f32.mrb[0].mxu0
      %v787 = vpop.f32.mrb[0].mxu0
      %v788 = vadd.f32 %v736, %v787
      %v789 = vpop.f32.mrb[0].mxu0
      %790 = vdwg.mxu0
      %v791 = vpack.c.bf16 %v667, %v664
      %793 = vrot.lane.b32.xlu0 %v791, 120
      %v794 = vpop.permute.xlu0 %793
      %795 = vrot.lane.b32.xlu0 %v791, 112
      %v796 = vpop.permute.xlu0 %795
      %797 = vrot.lane.b32.xlu0 %v791, 104
      %v798 = vpop.permute.xlu0 %797
      %v799 = vunpack.c.l.b16 %v791
      %v800 = vunpack.c.h.b16 %v791
      %v801 = vunpack.c.l.b16 %v794
      %v802 = vunpack.c.h.b16 %v794
      %v803 = vunpack.c.l.b16 %v796
      %v804 = vunpack.c.h.b16 %v796
      %v805 = vunpack.c.l.b16 %v798
      %v806 = vunpack.c.h.b16 %v798
      %v807 = vpack.c.b16 %v799, %v799
      %v808 = vpack.c.b16 %v800, %v800
      %v809 = vpack.c.b16 %v801, %v801
      %v810 = vpack.c.b16 %v802, %v802
      %v811 = vpack.c.b16 %v803, %v803
      %v812 = vpack.c.b16 %v804, %v804
      %v813 = vpack.c.b16 %v805, %v805
      %v814 = vpack.c.b16 %v806, %v806
      %v815 = vpack.c.bf16 %v729, %v726
      %817 = vrot.lane.b32.xlu0 %v815, 120
      %v818 = vpop.permute.xlu0 %817
      %819 = vrot.lane.b32.xlu0 %v815, 112
      %v820 = vpop.permute.xlu0 %819
      %821 = vrot.lane.b32.xlu0 %v815, 104
      %v822 = vpop.permute.xlu0 %821
      %v823 = vunpack.c.l.b16 %v815
      %v824 = vunpack.c.h.b16 %v815
      %v825 = vunpack.c.l.b16 %v818
      %v826 = vunpack.c.h.b16 %v818
      %v827 = vunpack.c.l.b16 %v820
      %v828 = vunpack.c.h.b16 %v820
      %v829 = vunpack.c.l.b16 %v822
      %v830 = vunpack.c.h.b16 %v822
      %v831 = vpack.c.b16 %v823, %v823
      %v832 = vpack.c.b16 %v824, %v824
      %v833 = vpack.c.b16 %v825, %v825
      %v834 = vpack.c.b16 %v826, %v826
      %v835 = vpack.c.b16 %v827, %v827
      %v836 = vpack.c.b16 %v828, %v828
      %v837 = vpack.c.b16 %v829, %v829
      %v838 = vpack.c.b16 %v830, %v830
      %v839 = vpack.c.bf16 %v788, %v785
      %841 = vrot.lane.b32.xlu0 %v839, 120
      %v842 = vpop.permute.xlu0 %841
      %843 = vrot.lane.b32.xlu0 %v839, 112
      %v844 = vpop.permute.xlu0 %843
      %845 = vrot.lane.b32.xlu0 %v839, 104
      %v846 = vpop.permute.xlu0 %845
      %v847 = vunpack.c.l.b16 %v839
      %v848 = vunpack.c.h.b16 %v839
      %v849 = vunpack.c.l.b16 %v842
      %v850 = vunpack.c.h.b16 %v842
      %v851 = vunpack.c.l.b16 %v844
      %v852 = vunpack.c.h.b16 %v844
      %v853 = vunpack.c.l.b16 %v846
      %v854 = vunpack.c.h.b16 %v846
      %v855 = vpack.c.b16 %v847, %v847
      %v856 = vpack.c.b16 %v848, %v848
      %v857 = vpack.c.b16 %v849, %v849
      %v858 = vpack.c.b16 %v850, %v850
      %v859 = vpack.c.b16 %v851, %v851
      %v860 = vpack.c.b16 %v852, %v852
      %v861 = vpack.c.b16 %v853, %v853
      %v862 = vpack.c.b16 %v854, %v854
      %vm863 = vcmask 64512
      %v865 = vsel %vm863, %v807, 0
      %v868 = vsel %vm863, %v831, 0
      %870 = vmatprep.subr.bf16.mxu0 0
      %871 = vmatpush1.bf16.xpose.msra.mxu0 %v868
      %872 = vmatprep.subr.bf16.mxu0 0
      %873 = vmatpush1.bf16.xpose.msra.mxu0 0
      %874 = vmatprep.subr.bf16.mxu0 0
      %875 = vmatpush1.bf16.xpose.msra.mxu0 0
      %876 = vmatprep.subr.bf16.mxu0 0
      %877 = vmatpush1.bf16.xpose.msra.mxu0 0
      %878 = vmatprep.subr.bf16.mxu0 0
      %879 = vmatpush1.bf16.xpose.msra.mxu0 0
      %880 = vmatprep.subr.bf16.mxu0 0
      %881 = vmatpush1.bf16.xpose.msra.mxu0 0
      %882 = vmatprep.subr.bf16.mxu0 0
      %883 = vmatpush1.bf16.xpose.msra.mxu0 0
      %884 = vmatprep.subr.bf16.mxu0 0
      %885 = vmatpush1.bf16.xpose.msra.mxu0 0
      %886 = vmatprep.subr.bf16.mxu0 0
      %887 = vmatpush1.bf16.xpose.msra.mxu0 0
      %888 = vmatprep.subr.bf16.mxu0 0
      %889 = vmatpush1.bf16.xpose.msra.mxu0 0
      %890 = vmatprep.subr.bf16.mxu0 0
      %891 = vmatpush1.bf16.xpose.msra.mxu0 0
      %892 = vmatprep.subr.bf16.mxu0 0
      %893 = vmatpush1.bf16.xpose.msra.mxu0 0
      %894 = vmatprep.subr.bf16.mxu0 0
      %895 = vmatpush1.bf16.xpose.msra.mxu0 0
      %896 = vmatprep.subr.bf16.mxu0 0
      %897 = vmatpush1.bf16.xpose.msra.mxu0 0
      %898 = vmatprep.subr.bf16.mxu0 0
      %899 = vmatpush1.bf16.xpose.msra.mxu0 0
      %900 = vmatprep.subr.bf16.mxu0 0
      %901 = vmatpush1.bf16.xpose.msra.mxu0 0
      %902 = vmatprep.mubr.bf16.mxu0 0
      %903 = vmatmul.mubr.bf16.gmra.mrb[0].mxu0 %v865
      %v904 = vpop.f32.mrb[0].mxu0
      %v905 = vadd.f32 0.0, %v904
      %v906 = vpop.f32.mrb[0].mxu0
      %v907 = vpop.f32.mrb[0].mxu0
      %v908 = vpop.f32.mrb[0].mxu0
      %909 = vdwg.mxu0
      %v911 = vsel %vm863, %v808, 0
      %v914 = vsel %vm863, %v832, 0
      %916 = vmatprep.subr.bf16.mxu0 0
      %917 = vmatpush1.bf16.xpose.msra.mxu0 %v914
      %918 = vmatprep.subr.bf16.mxu0 0
      %919 = vmatpush1.bf16.xpose.msra.mxu0 0
      %920 = vmatprep.subr.bf16.mxu0 0
      %921 = vmatpush1.bf16.xpose.msra.mxu0 0
      %922 = vmatprep.subr.bf16.mxu0 0
      %923 = vmatpush1.bf16.xpose.msra.mxu0 0
      %924 = vmatprep.subr.bf16.mxu0 0
      %925 = vmatpush1.bf16.xpose.msra.mxu0 0
      %926 = vmatprep.subr.bf16.mxu0 0
      %927 = vmatpush1.bf16.xpose.msra.mxu0 0
      %928 = vmatprep.subr.bf16.mxu0 0
      %929 = vmatpush1.bf16.xpose.msra.mxu0 0
      %930 = vmatprep.subr.bf16.mxu0 0
      %931 = vmatpush1.bf16.xpose.msra.mxu0 0
      %932 = vmatprep.subr.bf16.mxu0 0
      %933 = vmatpush1.bf16.xpose.msra.mxu0 0
      %934 = vmatprep.subr.bf16.mxu0 0
      %935 = vmatpush1.bf16.xpose.msra.mxu0 0
      %936 = vmatprep.subr.bf16.mxu0 0
      %937 = vmatpush1.bf16.xpose.msra.mxu0 0
      %938 = vmatprep.subr.bf16.mxu0 0
      %939 = vmatpush1.bf16.xpose.msra.mxu0 0
      %940 = vmatprep.subr.bf16.mxu0 0
      %941 = vmatpush1.bf16.xpose.msra.mxu0 0
      %942 = vmatprep.subr.bf16.mxu0 0
      %943 = vmatpush1.bf16.xpose.msra.mxu0 0
      %944 = vmatprep.subr.bf16.mxu0 0
      %945 = vmatpush1.bf16.xpose.msra.mxu0 0
      %946 = vmatprep.subr.bf16.mxu0 0
      %947 = vmatpush1.bf16.xpose.msra.mxu0 0
      %948 = vmatprep.mubr.bf16.mxu0 0
      %949 = vmatmul.mubr.bf16.gmra.mrb[0].mxu0 %v911
      %v950 = vpop.f32.mrb[0].mxu0
      %v951 = vadd.f32 0.0, %v950
      %v952 = vpop.f32.mrb[0].mxu0
      %v953 = vpop.f32.mrb[0].mxu0
      %v954 = vpop.f32.mrb[0].mxu0
      %955 = vdwg.mxu0
      %v957 = vsel %vm863, %v809, 0
      %v960 = vsel %vm863, %v833, 0
      %962 = vmatprep.subr.bf16.mxu0 0
      %963 = vmatpush1.bf16.xpose.msra.mxu0 %v960
      %964 = vmatprep.subr.bf16.mxu0 0
      %965 = vmatpush1.bf16.xpose.msra.mxu0 0
      %966 = vmatprep.subr.bf16.mxu0 0
      %967 = vmatpush1.bf16.xpose.msra.mxu0 0
      %968 = vmatprep.subr.bf16.mxu0 0
      %969 = vmatpush1.bf16.xpose.msra.mxu0 0
      %970 = vmatprep.subr.bf16.mxu0 0
      %971 = vmatpush1.bf16.xpose.msra.mxu0 0
      %972 = vmatprep.subr.bf16.mxu0 0
      %973 = vmatpush1.bf16.xpose.msra.mxu0 0
      %974 = vmatprep.subr.bf16.mxu0 0
      %975 = vmatpush1.bf16.xpose.msra.mxu0 0
      %976 = vmatprep.subr.bf16.mxu0 0
      %977 = vmatpush1.bf16.xpose.msra.mxu0 0
      %978 = vmatprep.subr.bf16.mxu0 0
      %979 = vmatpush1.bf16.xpose.msra.mxu0 0
      %980 = vmatprep.subr.bf16.mxu0 0
      %981 = vmatpush1.bf16.xpose.msra.mxu0 0
      %982 = vmatprep.subr.bf16.mxu0 0
      %983 = vmatpush1.bf16.xpose.msra.mxu0 0
      %984 = vmatprep.subr.bf16.mxu0 0
      %985 = vmatpush1.bf16.xpose.msra.mxu0 0
      %986 = vmatprep.subr.bf16.mxu0 0
      %987 = vmatpush1.bf16.xpose.msra.mxu0 0
      %988 = vmatprep.subr.bf16.mxu0 0
      %989 = vmatpush1.bf16.xpose.msra.mxu0 0
      %990 = vmatprep.subr.bf16.mxu0 0
      %991 = vmatpush1.bf16.xpose.msra.mxu0 0
      %992 = vmatprep.subr.bf16.mxu0 0
      %993 = vmatpush1.bf16.xpose.msra.mxu0 0
      %994 = vmatprep.mubr.bf16.mxu0 0
      %995 = vmatmul.mubr.bf16.gmra.mrb[0].mxu0 %v957
      %v996 = vpop.f32.mrb[0].mxu0
      %v997 = vadd.f32 0.0, %v996
      %v998 = vpop.f32.mrb[0].mxu0
      %v999 = vpop.f32.mrb[0].mxu0
      %v1000 = vpop.f32.mrb[0].mxu0
      %1001 = vdwg.mxu0
      %v1003 = vsel %vm863, %v810, 0
      %v1006 = vsel %vm863, %v834, 0
      %1008 = vmatprep.subr.bf16.mxu0 0
      %1009 = vmatpush1.bf16.xpose.msra.mxu0 %v1006
      %1010 = vmatprep.subr.bf16.mxu0 0
      %1011 = vmatpush1.bf16.xpose.msra.mxu0 0
      %1012 = vmatprep.subr.bf16.mxu0 0
      %1013 = vmatpush1.bf16.xpose.msra.mxu0 0
      %1014 = vmatprep.subr.bf16.mxu0 0
      %1015 = vmatpush1.bf16.xpose.msra.mxu0 0
      %1016 = vmatprep.subr.bf16.mxu0 0
      %1017 = vmatpush1.bf16.xpose.msra.mxu0 0
      %1018 = vmatprep.subr.bf16.mxu0 0
      %1019 = vmatpush1.bf16.xpose.msra.mxu0 0
      %1020 = vmatprep.subr.bf16.mxu0 0
      %1021 = vmatpush1.bf16.xpose.msra.mxu0 0
      %1022 = vmatprep.subr.bf16.mxu0 0
      %1023 = vmatpush1.bf16.xpose.msra.mxu0 0
      %1024 = vmatprep.subr.bf16.mxu0 0
      %1025 = vmatpush1.bf16.xpose.msra.mxu0 0
      %1026 = vmatprep.subr.bf16.mxu0 0
      %1027 = vmatpush1.bf16.xpose.msra.mxu0 0
      %1028 = vmatprep.subr.bf16.mxu0 0
      %1029 = vmatpush1.bf16.xpose.msra.mxu0 0
      %1030 = vmatprep.subr.bf16.mxu0 0
      %1031 = vmatpush1.bf16.xpose.msra.mxu0 0
      %1032 = vmatprep.subr.bf16.mxu0 0
      %1033 = vmatpush1.bf16.xpose.msra.mxu0 0
      %1034 = vmatprep.subr.bf16.mxu0 0
      %1035 = vmatpush1.bf16.xpose.msra.mxu0 0
      %1036 = vmatprep.subr.bf16.mxu0 0
      %1037 = vmatpush1.bf16.xpose.msra.mxu0 0
      %1038 = vmatprep.subr.bf16.mxu0 0
      %1039 = vmatpush1.bf16.xpose.msra.mxu0 0
      %1040 = vmatprep.mubr.bf16.mxu0 0
      %1041 = vmatmul.mubr.bf16.gmra.mrb[0].mxu0 %v1003
      %v1042 = vpop.f32.mrb[0].mxu0
      %v1043 = vadd.f32 0.0, %v1042
      %v1044 = vpop.f32.mrb[0].mxu0
      %v1045 = vpop.f32.mrb[0].mxu0
      %v1046 = vpop.f32.mrb[0].mxu0
      %1047 = vdwg.mxu0
      %v1049 = vsel %vm863, %v811, 0
      %v1052 = vsel %vm863, %v835, 0
      %1054 = vmatprep.subr.bf16.mxu0 0
      %1055 = vmatpush1.bf16.xpose.msra.mxu0 %v1052
      %1056 = vmatprep.subr.bf16.mxu0 0
      %1057 = vmatpush1.bf16.xpose.msra.mxu0 0
      %1058 = vmatprep.subr.bf16.mxu0 0
      %1059 = vmatpush1.bf16.xpose.msra.mxu0 0
      %1060 = vmatprep.subr.bf16.mxu0 0
      %1061 = vmatpush1.bf16.xpose.msra.mxu0 0
      %1062 = vmatprep.subr.bf16.mxu0 0
      %1063 = vmatpush1.bf16.xpose.msra.mxu0 0
      %1064 = vmatprep.subr.bf16.mxu0 0
      %1065 = vmatpush1.bf16.xpose.msra.mxu0 0
      %1066 = vmatprep.subr.bf16.mxu0 0
      %1067 = vmatpush1.bf16.xpose.msra.mxu0 0
      %1068 = vmatprep.subr.bf16.mxu0 0
      %1069 = vmatpush1.bf16.xpose.msra.mxu0 0
      %1070 = vmatprep.subr.bf16.mxu0 0
      %1071 = vmatpush1.bf16.xpose.msra.mxu0 0
      %1072 = vmatprep.subr.bf16.mxu0 0
      %1073 = vmatpush1.bf16.xpose.msra.mxu0 0
      %1074 = vmatprep.subr.bf16.mxu0 0
      %1075 = vmatpush1.bf16.xpose.msra.mxu0 0
      %1076 = vmatprep.subr.bf16.mxu0 0
      %1077 = vmatpush1.bf16.xpose.msra.mxu0 0
      %1078 = vmatprep.subr.bf16.mxu0 0
      %1079 = vmatpush1.bf16.xpose.msra.mxu0 0
      %1080 = vmatprep.subr.bf16.mxu0 0
      %1081 = vmatpush1.bf16.xpose.msra.mxu0 0
      %1082 = vmatprep.subr.bf16.mxu0 0
      %1083 = vmatpush1.bf16.xpose.msra.mxu0 0
      %1084 = vmatprep.subr.bf16.mxu0 0
      %1085 = vmatpush1.bf16.xpose.msra.mxu0 0
      %1086 = vmatprep.mubr.bf16.mxu0 0
      %1087 = vmatmul.mubr.bf16.gmra.mrb[0].mxu0 %v1049
      %v1088 = vpop.f32.mrb[0].mxu0
      %v1089 = vadd.f32 0.0, %v1088
      %v1090 = vpop.f32.mrb[0].mxu0
      %v1091 = vpop.f32.mrb[0].mxu0
      %v1092 = vpop.f32.mrb[0].mxu0
      %1093 = vdwg.mxu0
      %v1095 = vsel %vm863, %v812, 0
      %v1098 = vsel %vm863, %v836, 0
      %1100 = vmatprep.subr.bf16.mxu0 0
      %1101 = vmatpush1.bf16.xpose.msra.mxu0 %v1098
      %1102 = vmatprep.subr.bf16.mxu0 0
      %1103 = vmatpush1.bf16.xpose.msra.mxu0 0
      %1104 = vmatprep.subr.bf16.mxu0 0
      %1105 = vmatpush1.bf16.xpose.msra.mxu0 0
      %1106 = vmatprep.subr.bf16.mxu0 0
      %1107 = vmatpush1.bf16.xpose.msra.mxu0 0
      %1108 = vmatprep.subr.bf16.mxu0 0
      %1109 = vmatpush1.bf16.xpose.msra.mxu0 0
      %1110 = vmatprep.subr.bf16.mxu0 0
      %1111 = vmatpush1.bf16.xpose.msra.mxu0 0
      %1112 = vmatprep.subr.bf16.mxu0 0
      %1113 = vmatpush1.bf16.xpose.msra.mxu0 0
      %1114 = vmatprep.subr.bf16.mxu0 0
      %1115 = vmatpush1.bf16.xpose.msra.mxu0 0
      %1116 = vmatprep.subr.bf16.mxu0 0
      %1117 = vmatpush1.bf16.xpose.msra.mxu0 0
      %1118 = vmatprep.subr.bf16.mxu0 0
      %1119 = vmatpush1.bf16.xpose.msra.mxu0 0
      %1120 = vmatprep.subr.bf16.mxu0 0
      %1121 = vmatpush1.bf16.xpose.msra.mxu0 0
      %1122 = vmatprep.subr.bf16.mxu0 0
      %1123 = vmatpush1.bf16.xpose.msra.mxu0 0
      %1124 = vmatprep.subr.bf16.mxu0 0
      %1125 = vmatpush1.bf16.xpose.msra.mxu0 0
      %1126 = vmatprep.subr.bf16.mxu0 0
      %1127 = vmatpush1.bf16.xpose.msra.mxu0 0
      %1128 = vmatprep.subr.bf16.mxu0 0
      %1129 = vmatpush1.bf16.xpose.msra.mxu0 0
      %1130 = vmatprep.subr.bf16.mxu0 0
      %1131 = vmatpush1.bf16.xpose.msra.mxu0 0
      %1132 = vmatprep.mubr.bf16.mxu0 0
      %1133 = vmatmul.mubr.bf16.gmra.mrb[0].mxu0 %v1095
      %v1134 = vpop.f32.mrb[0].mxu0
      %v1135 = vadd.f32 0.0, %v1134
      %v1136 = vpop.f32.mrb[0].mxu0
      %v1137 = vpop.f32.mrb[0].mxu0
      %v1138 = vpop.f32.mrb[0].mxu0
      %1139 = vdwg.mxu0
      %v1141 = vsel %vm863, %v813, 0
      %v1144 = vsel %vm863, %v837, 0
      %1146 = vmatprep.subr.bf16.mxu0 0
      %1147 = vmatpush1.bf16.xpose.msra.mxu0 %v1144
      %1148 = vmatprep.subr.bf16.mxu0 0
      %1149 = vmatpush1.bf16.xpose.msra.mxu0 0
      %1150 = vmatprep.subr.bf16.mxu0 0
      %1151 = vmatpush1.bf16.xpose.msra.mxu0 0
      %1152 = vmatprep.subr.bf16.mxu0 0
      %1153 = vmatpush1.bf16.xpose.msra.mxu0 0
      %1154 = vmatprep.subr.bf16.mxu0 0
      %1155 = vmatpush1.bf16.xpose.msra.mxu0 0
      %1156 = vmatprep.subr.bf16.mxu0 0
      %1157 = vmatpush1.bf16.xpose.msra.mxu0 0
      %1158 = vmatprep.subr.bf16.mxu0 0
      %1159 = vmatpush1.bf16.xpose.msra.mxu0 0
      %1160 = vmatprep.subr.bf16.mxu0 0
      %1161 = vmatpush1.bf16.xpose.msra.mxu0 0
      %1162 = vmatprep.subr.bf16.mxu0 0
      %1163 = vmatpush1.bf16.xpose.msra.mxu0 0
      %1164 = vmatprep.subr.bf16.mxu0 0
      %1165 = vmatpush1.bf16.xpose.msra.mxu0 0
      %1166 = vmatprep.subr.bf16.mxu0 0
      %1167 = vmatpush1.bf16.xpose.msra.mxu0 0
      %1168 = vmatprep.subr.bf16.mxu0 0
      %1169 = vmatpush1.bf16.xpose.msra.mxu0 0
      %1170 = vmatprep.subr.bf16.mxu0 0
      %1171 = vmatpush1.bf16.xpose.msra.mxu0 0
      %1172 = vmatprep.subr.bf16.mxu0 0
      %1173 = vmatpush1.bf16.xpose.msra.mxu0 0
      %1174 = vmatprep.subr.bf16.mxu0 0
      %1175 = vmatpush1.bf16.xpose.msra.mxu0 0
      %1176 = vmatprep.subr.bf16.mxu0 0
      %1177 = vmatpush1.bf16.xpose.msra.mxu0 0
      %1178 = vmatprep.mubr.bf16.mxu0 0
      %1179 = vmatmul.mubr.bf16.gmra.mrb[0].mxu0 %v1141
      %v1180 = vpop.f32.mrb[0].mxu0
      %v1181 = vadd.f32 0.0, %v1180
      %v1182 = vpop.f32.mrb[0].mxu0
      %v1183 = vpop.f32.mrb[0].mxu0
      %v1184 = vpop.f32.mrb[0].mxu0
      %1185 = vdwg.mxu0
      %v1187 = vsel %vm863, %v814, 0
      %v1190 = vsel %vm863, %v838, 0
      %1192 = vmatprep.subr.bf16.mxu0 0
      %1193 = vmatpush1.bf16.xpose.msra.mxu0 %v1190
      %1194 = vmatprep.subr.bf16.mxu0 0
      %1195 = vmatpush1.bf16.xpose.msra.mxu0 0
      %1196 = vmatprep.subr.bf16.mxu0 0
      %1197 = vmatpush1.bf16.xpose.msra.mxu0 0
      %1198 = vmatprep.subr.bf16.mxu0 0
      %1199 = vmatpush1.bf16.xpose.msra.mxu0 0
      %1200 = vmatprep.subr.bf16.mxu0 0
      %1201 = vmatpush1.bf16.xpose.msra.mxu0 0
      %1202 = vmatprep.subr.bf16.mxu0 0
      %1203 = vmatpush1.bf16.xpose.msra.mxu0 0
      %1204 = vmatprep.subr.bf16.mxu0 0
      %1205 = vmatpush1.bf16.xpose.msra.mxu0 0
      %1206 = vmatprep.subr.bf16.mxu0 0
      %1207 = vmatpush1.bf16.xpose.msra.mxu0 0
      %1208 = vmatprep.subr.bf16.mxu0 0
      %1209 = vmatpush1.bf16.xpose.msra.mxu0 0
      %1210 = vmatprep.subr.bf16.mxu0 0
      %1211 = vmatpush1.bf16.xpose.msra.mxu0 0
      %1212 = vmatprep.subr.bf16.mxu0 0
      %1213 = vmatpush1.bf16.xpose.msra.mxu0 0
      %1214 = vmatprep.subr.bf16.mxu0 0
      %1215 = vmatpush1.bf16.xpose.msra.mxu0 0
      %1216 = vmatprep.subr.bf16.mxu0 0
      %1217 = vmatpush1.bf16.xpose.msra.mxu0 0
      %1218 = vmatprep.subr.bf16.mxu0 0
      %1219 = vmatpush1.bf16.xpose.msra.mxu0 0
      %1220 = vmatprep.subr.bf16.mxu0 0
      %1221 = vmatpush1.bf16.xpose.msra.mxu0 0
      %1222 = vmatprep.subr.bf16.mxu0 0
      %1223 = vmatpush1.bf16.xpose.msra.mxu0 0
      %1224 = vmatprep.mubr.bf16.mxu0 0
      %1225 = vmatmul.mubr.bf16.gmra.mrb[0].mxu0 %v1187
      %v1226 = vpop.f32.mrb[0].mxu0
      %v1227 = vadd.f32 0.0, %v1226
      %v1228 = vpop.f32.mrb[0].mxu0
      %v1229 = vpop.f32.mrb[0].mxu0
      %v1230 = vpop.f32.mrb[0].mxu0
      %1231 = vdwg.mxu0
      %v1232 = vsel %vm863, %v905, -inf
      %1233 = vmax.xlane.f32.xlu0 %v1232
      %v1234 = vpop.xlane.xlu0 %1233
      %v1235 = vsel %vm863, %v951, -inf
      %1236 = vmax.xlane.f32.xlu0 %v1235
      %v1237 = vpop.xlane.xlu0 %1236
      %v1238 = vsel %vm863, %v997, -inf
      %1239 = vmax.xlane.f32.xlu0 %v1238
      %v1240 = vpop.xlane.xlu0 %1239
      %v1241 = vsel %vm863, %v1043, -inf
      %1242 = vmax.xlane.f32.xlu0 %v1241
      %v1243 = vpop.xlane.xlu0 %1242
      %v1244 = vsel %vm863, %v1089, -inf
      %1245 = vmax.xlane.f32.xlu0 %v1244
      %v1246 = vpop.xlane.xlu0 %1245
      %v1247 = vsel %vm863, %v1135, -inf
      %1248 = vmax.xlane.f32.xlu0 %v1247
      %v1249 = vpop.xlane.xlu0 %1248
      %v1250 = vsel %vm863, %v1181, -inf
      %1251 = vmax.xlane.f32.xlu0 %v1250
      %v1252 = vpop.xlane.xlu0 %1251
      %v1253 = vsel %vm863, %v1227, -inf
      %1254 = vmax.xlane.f32.xlu0 %v1253
      %v1255 = vpop.xlane.xlu0 %1254
      %v1256 = vsub.f32 %v905, %v1234
      %v1257 = vsub.f32 %v951, %v1237
      %v1258 = vsub.f32 %v997, %v1240
      %v1259 = vsub.f32 %v1043, %v1243
      %v1260 = vsub.f32 %v1089, %v1246
      %v1261 = vsub.f32 %v1135, %v1249
      %v1262 = vsub.f32 %v1181, %v1252
      %v1263 = vsub.f32 %v1227, %v1255
      %v1264 = vmul.f32 %v1256, 1.442695
      %v1265 = vpow.pop %v1264
      %v1266 = vmul.f32 %v1257, 1.442695
      %v1267 = vpow.pop %v1266
      %v1268 = vmul.f32 %v1258, 1.442695
      %v1269 = vpow.pop %v1268
      %v1270 = vmul.f32 %v1259, 1.442695
      %v1271 = vpow.pop %v1270
      %v1272 = vmul.f32 %v1260, 1.442695
      %v1273 = vpow.pop %v1272
      %v1274 = vmul.f32 %v1261, 1.442695
      %v1275 = vpow.pop %v1274
      %v1276 = vmul.f32 %v1262, 1.442695
      %v1277 = vpow.pop %v1276
      %v1278 = vmul.f32 %v1263, 1.442695
      %v1279 = vpow.pop %v1278
      %v1280 = vsel %vm863, %v1265, 0.0
      %1281 = vadd.xlane.f32.xlu0 %v1280
      %v1282 = vpop.xlane.xlu0 %1281
      %v1283 = vsel %vm863, %v1267, 0.0
      %1284 = vadd.xlane.f32.xlu0 %v1283
      %v1285 = vpop.xlane.xlu0 %1284
      %v1286 = vsel %vm863, %v1269, 0.0
      %1287 = vadd.xlane.f32.xlu0 %v1286
      %v1288 = vpop.xlane.xlu0 %1287
      %v1289 = vsel %vm863, %v1271, 0.0
      %1290 = vadd.xlane.f32.xlu0 %v1289
      %v1291 = vpop.xlane.xlu0 %1290
      %v1292 = vsel %vm863, %v1273, 0.0
      %1293 = vadd.xlane.f32.xlu0 %v1292
      %v1294 = vpop.xlane.xlu0 %1293
      %v1295 = vsel %vm863, %v1275, 0.0
      %1296 = vadd.xlane.f32.xlu0 %v1295
      %v1297 = vpop.xlane.xlu0 %1296
      %v1298 = vsel %vm863, %v1277, 0.0
      %1299 = vadd.xlane.f32.xlu0 %v1298
      %v1300 = vpop.xlane.xlu0 %1299
      %v1301 = vsel %vm863, %v1279, 0.0
      %1302 = vadd.xlane.f32.xlu0 %v1301
      %v1303 = vpop.xlane.xlu0 %1302
      %v1304 = vrcp.pop %v1282
      %v1305 = vrcp.pop %v1285
      %v1306 = vrcp.pop %v1288
      %v1307 = vrcp.pop %v1291
      %v1308 = vrcp.pop %v1294
      %v1309 = vrcp.pop %v1297
      %v1310 = vrcp.pop %v1300
      %v1311 = vrcp.pop %v1303
      %v1312 = vmul.f32 %v1265, %v1304
      %v1313 = vmul.f32 %v1267, %v1305
      %v1314 = vmul.f32 %v1269, %v1306
      %v1315 = vmul.f32 %v1271, %v1307
      %v1316 = vmul.f32 %v1273, %v1308
      %v1317 = vmul.f32 %v1275, %v1309
      %v1318 = vmul.f32 %v1277, %v1310
      %v1319 = vmul.f32 %v1279, %v1311
      %v1320 = vpack.c.bf16 %v1312, %v1312
      %v1321 = vpack.c.bf16 %v1313, %v1313
      %v1322 = vpack.c.bf16 %v1314, %v1314
      %v1323 = vpack.c.bf16 %v1315, %v1315
      %v1324 = vpack.c.bf16 %v1316, %v1316
      %v1325 = vpack.c.bf16 %v1317, %v1317
      %v1326 = vpack.c.bf16 %v1318, %v1318
      %v1327 = vpack.c.bf16 %v1319, %v1319
      %v1329 = vsel %vm863, %v1320, 0
      %vm1331 = vcmask 1043456
      %v1333 = vsel %vm1331, %v855, 0
      %1335 = vmatprep.subr.bf16.mxu0 0
      %1336 = vmatpush1.bf16.msra.mxu0 %v1333
      %1337 = vmatprep.subr.bf16.mxu0 0
      %1338 = vmatpush1.bf16.msra.mxu0 0
      %1339 = vmatprep.subr.bf16.mxu0 0
      %1340 = vmatpush1.bf16.msra.mxu0 0
      %1341 = vmatprep.subr.bf16.mxu0 0
      %1342 = vmatpush1.bf16.msra.mxu0 0
      %1343 = vmatprep.subr.bf16.mxu0 0
      %1344 = vmatpush1.bf16.msra.mxu0 0
      %1345 = vmatprep.subr.bf16.mxu0 0
      %1346 = vmatpush1.bf16.msra.mxu0 0
      %1347 = vmatprep.subr.bf16.mxu0 0
      %1348 = vmatpush1.bf16.msra.mxu0 0
      %1349 = vmatprep.subr.bf16.mxu0 0
      %1350 = vmatpush1.bf16.msra.mxu0 0
      %1351 = vmatprep.subr.bf16.mxu0 0
      %1352 = vmatpush1.bf16.msra.mxu0 0
      %1353 = vmatprep.subr.bf16.mxu0 0
      %1354 = vmatpush1.bf16.msra.mxu0 0
      %1355 = vmatprep.subr.bf16.mxu0 0
      %1356 = vmatpush1.bf16.msra.mxu0 0
      %1357 = vmatprep.subr.bf16.mxu0 0
      %1358 = vmatpush1.bf16.msra.mxu0 0
      %1359 = vmatprep.subr.bf16.mxu0 0
      %1360 = vmatpush1.bf16.msra.mxu0 0
      %1361 = vmatprep.subr.bf16.mxu0 0
      %1362 = vmatpush1.bf16.msra.mxu0 0
      %1363 = vmatprep.subr.bf16.mxu0 0
      %1364 = vmatpush1.bf16.msra.mxu0 0
      %1365 = vmatprep.subr.bf16.mxu0 0
      %1366 = vmatpush1.bf16.msra.mxu0 0
      %1367 = vmatprep.mubr.bf16.mxu0 0
      %1368 = vmatmul.mubr.bf16.gmra.mrb[0].mxu0 %v1329
      %v1369 = vpop.f32.mrb[0].mxu0
      %v1370 = vadd.f32 0.0, %v1369
      %v1371 = vpop.f32.mrb[0].mxu0
      %v1372 = vpop.f32.mrb[0].mxu0
      %v1373 = vpop.f32.mrb[0].mxu0
      %1374 = vdwg.mxu0
      %v1376 = vsel %vm863, %v1321, 0
      %v1379 = vsel %vm1331, %v856, 0
      %1381 = vmatprep.subr.bf16.mxu0 0
      %1382 = vmatpush1.bf16.msra.mxu0 %v1379
      %1383 = vmatprep.subr.bf16.mxu0 0
      %1384 = vmatpush1.bf16.msra.mxu0 0
      %1385 = vmatprep.subr.bf16.mxu0 0
      %1386 = vmatpush1.bf16.msra.mxu0 0
      %1387 = vmatprep.subr.bf16.mxu0 0
      %1388 = vmatpush1.bf16.msra.mxu0 0
      %1389 = vmatprep.subr.bf16.mxu0 0
      %1390 = vmatpush1.bf16.msra.mxu0 0
      %1391 = vmatprep.subr.bf16.mxu0 0
      %1392 = vmatpush1.bf16.msra.mxu0 0
      %1393 = vmatprep.subr.bf16.mxu0 0
      %1394 = vmatpush1.bf16.msra.mxu0 0
      %1395 = vmatprep.subr.bf16.mxu0 0
      %1396 = vmatpush1.bf16.msra.mxu0 0
      %1397 = vmatprep.subr.bf16.mxu0 0
      %1398 = vmatpush1.bf16.msra.mxu0 0
      %1399 = vmatprep.subr.bf16.mxu0 0
      %1400 = vmatpush1.bf16.msra.mxu0 0
      %1401 = vmatprep.subr.bf16.mxu0 0
      %1402 = vmatpush1.bf16.msra.mxu0 0
      %1403 = vmatprep.subr.bf16.mxu0 0
      %1404 = vmatpush1.bf16.msra.mxu0 0
      %1405 = vmatprep.subr.bf16.mxu0 0
      %1406 = vmatpush1.bf16.msra.mxu0 0
      %1407 = vmatprep.subr.bf16.mxu0 0
      %1408 = vmatpush1.bf16.msra.mxu0 0
      %1409 = vmatprep.subr.bf16.mxu0 0
      %1410 = vmatpush1.bf16.msra.mxu0 0
      %1411 = vmatprep.subr.bf16.mxu0 0
      %1412 = vmatpush1.bf16.msra.mxu0 0
      %1413 = vmatprep.mubr.bf16.mxu0 0
      %1414 = vmatmul.mubr.bf16.gmra.mrb[0].mxu0 %v1376
      %v1415 = vpop.f32.mrb[0].mxu0
      %v1416 = vadd.f32 0.0, %v1415
      %v1417 = vpop.f32.mrb[0].mxu0
      %v1418 = vpop.f32.mrb[0].mxu0
      %v1419 = vpop.f32.mrb[0].mxu0
      %1420 = vdwg.mxu0
      %v1422 = vsel %vm863, %v1322, 0
      %v1425 = vsel %vm1331, %v857, 0
      %1427 = vmatprep.subr.bf16.mxu0 0
      %1428 = vmatpush1.bf16.msra.mxu0 %v1425
      %1429 = vmatprep.subr.bf16.mxu0 0
      %1430 = vmatpush1.bf16.msra.mxu0 0
      %1431 = vmatprep.subr.bf16.mxu0 0
      %1432 = vmatpush1.bf16.msra.mxu0 0
      %1433 = vmatprep.subr.bf16.mxu0 0
      %1434 = vmatpush1.bf16.msra.mxu0 0
      %1435 = vmatprep.subr.bf16.mxu0 0
      %1436 = vmatpush1.bf16.msra.mxu0 0
      %1437 = vmatprep.subr.bf16.mxu0 0
      %1438 = vmatpush1.bf16.msra.mxu0 0
      %1439 = vmatprep.subr.bf16.mxu0 0
      %1440 = vmatpush1.bf16.msra.mxu0 0
      %1441 = vmatprep.subr.bf16.mxu0 0
      %1442 = vmatpush1.bf16.msra.mxu0 0
      %1443 = vmatprep.subr.bf16.mxu0 0
      %1444 = vmatpush1.bf16.msra.mxu0 0
      %1445 = vmatprep.subr.bf16.mxu0 0
      %1446 = vmatpush1.bf16.msra.mxu0 0
      %1447 = vmatprep.subr.bf16.mxu0 0
      %1448 = vmatpush1.bf16.msra.mxu0 0
      %1449 = vmatprep.subr.bf16.mxu0 0
      %1450 = vmatpush1.bf16.msra.mxu0 0
      %1451 = vmatprep.subr.bf16.mxu0 0
      %1452 = vmatpush1.bf16.msra.mxu0 0
      %1453 = vmatprep.subr.bf16.mxu0 0
      %1454 = vmatpush1.bf16.msra.mxu0 0
      %1455 = vmatprep.subr.bf16.mxu0 0
      %1456 = vmatpush1.bf16.msra.mxu0 0
      %1457 = vmatprep.subr.bf16.mxu0 0
      %1458 = vmatpush1.bf16.msra.mxu0 0
      %1459 = vmatprep.mubr.bf16.mxu0 0
      %1460 = vmatmul.mubr.bf16.gmra.mrb[0].mxu0 %v1422
      %v1461 = vpop.f32.mrb[0].mxu0
      %v1462 = vadd.f32 0.0, %v1461
      %v1463 = vpop.f32.mrb[0].mxu0
      %v1464 = vpop.f32.mrb[0].mxu0
      %v1465 = vpop.f32.mrb[0].mxu0
      %1466 = vdwg.mxu0
      %v1468 = vsel %vm863, %v1323, 0
      %v1471 = vsel %vm1331, %v858, 0
      %1473 = vmatprep.subr.bf16.mxu0 0
      %1474 = vmatpush1.bf16.msra.mxu0 %v1471
      %1475 = vmatprep.subr.bf16.mxu0 0
      %1476 = vmatpush1.bf16.msra.mxu0 0
      %1477 = vmatprep.subr.bf16.mxu0 0
      %1478 = vmatpush1.bf16.msra.mxu0 0
      %1479 = vmatprep.subr.bf16.mxu0 0
      %1480 = vmatpush1.bf16.msra.mxu0 0
      %1481 = vmatprep.subr.bf16.mxu0 0
      %1482 = vmatpush1.bf16.msra.mxu0 0
      %1483 = vmatprep.subr.bf16.mxu0 0
      %1484 = vmatpush1.bf16.msra.mxu0 0
      %1485 = vmatprep.subr.bf16.mxu0 0
      %1486 = vmatpush1.bf16.msra.mxu0 0
      %1487 = vmatprep.subr.bf16.mxu0 0
      %1488 = vmatpush1.bf16.msra.mxu0 0
      %1489 = vmatprep.subr.bf16.mxu0 0
      %1490 = vmatpush1.bf16.msra.mxu0 0
      %1491 = vmatprep.subr.bf16.mxu0 0
      %1492 = vmatpush1.bf16.msra.mxu0 0
      %1493 = vmatprep.subr.bf16.mxu0 0
      %1494 = vmatpush1.bf16.msra.mxu0 0
      %1495 = vmatprep.subr.bf16.mxu0 0
      %1496 = vmatpush1.bf16.msra.mxu0 0
      %1497 = vmatprep.subr.bf16.mxu0 0
      %1498 = vmatpush1.bf16.msra.mxu0 0
      %1499 = vmatprep.subr.bf16.mxu0 0
      %1500 = vmatpush1.bf16.msra.mxu0 0
      %1501 = vmatprep.subr.bf16.mxu0 0
      %1502 = vmatpush1.bf16.msra.mxu0 0
      %1503 = vmatprep.subr.bf16.mxu0 0
      %1504 = vmatpush1.bf16.msra.mxu0 0
      %1505 = vmatprep.mubr.bf16.mxu0 0
      %1506 = vmatmul.mubr.bf16.gmra.mrb[0].mxu0 %v1468
      %v1507 = vpop.f32.mrb[0].mxu0
      %v1508 = vadd.f32 0.0, %v1507
      %v1509 = vpop.f32.mrb[0].mxu0
      %v1510 = vpop.f32.mrb[0].mxu0
      %v1511 = vpop.f32.mrb[0].mxu0
      %1512 = vdwg.mxu0
      %v1514 = vsel %vm863, %v1324, 0
      %v1517 = vsel %vm1331, %v859, 0
      %1519 = vmatprep.subr.bf16.mxu0 0
      %1520 = vmatpush1.bf16.msra.mxu0 %v1517
      %1521 = vmatprep.subr.bf16.mxu0 0
      %1522 = vmatpush1.bf16.msra.mxu0 0
      %1523 = vmatprep.subr.bf16.mxu0 0
      %1524 = vmatpush1.bf16.msra.mxu0 0
      %1525 = vmatprep.subr.bf16.mxu0 0
      %1526 = vmatpush1.bf16.msra.mxu0 0
      %1527 = vmatprep.subr.bf16.mxu0 0
      %1528 = vmatpush1.bf16.msra.mxu0 0
      %1529 = vmatprep.subr.bf16.mxu0 0
      %1530 = vmatpush1.bf16.msra.mxu0 0
      %1531 = vmatprep.subr.bf16.mxu0 0
      %1532 = vmatpush1.bf16.msra.mxu0 0
      %1533 = vmatprep.subr.bf16.mxu0 0
      %1534 = vmatpush1.bf16.msra.mxu0 0
      %1535 = vmatprep.subr.bf16.mxu0 0
      %1536 = vmatpush1.bf16.msra.mxu0 0
      %1537 = vmatprep.subr.bf16.mxu0 0
      %1538 = vmatpush1.bf16.msra.mxu0 0
      %1539 = vmatprep.subr.bf16.mxu0 0
      %1540 = vmatpush1.bf16.msra.mxu0 0
      %1541 = vmatprep.subr.bf16.mxu0 0
      %1542 = vmatpush1.bf16.msra.mxu0 0
      %1543 = vmatprep.subr.bf16.mxu0 0
      %1544 = vmatpush1.bf16.msra.mxu0 0
      %1545 = vmatprep.subr.bf16.mxu0 0
      %1546 = vmatpush1.bf16.msra.mxu0 0
      %1547 = vmatprep.subr.bf16.mxu0 0
      %1548 = vmatpush1.bf16.msra.mxu0 0
      %1549 = vmatprep.subr.bf16.mxu0 0
      %1550 = vmatpush1.bf16.msra.mxu0 0
      %1551 = vmatprep.mubr.bf16.mxu0 0
      %1552 = vmatmul.mubr.bf16.gmra.mrb[0].mxu0 %v1514
      %v1553 = vpop.f32.mrb[0].mxu0
      %v1554 = vadd.f32 0.0, %v1553
      %v1555 = vpop.f32.mrb[0].mxu0
      %v1556 = vpop.f32.mrb[0].mxu0
      %v1557 = vpop.f32.mrb[0].mxu0
      %1558 = vdwg.mxu0
      %v1560 = vsel %vm863, %v1325, 0
      %v1563 = vsel %vm1331, %v860, 0
      %1565 = vmatprep.subr.bf16.mxu0 0
      %1566 = vmatpush1.bf16.msra.mxu0 %v1563
      %1567 = vmatprep.subr.bf16.mxu0 0
      %1568 = vmatpush1.bf16.msra.mxu0 0
      %1569 = vmatprep.subr.bf16.mxu0 0
      %1570 = vmatpush1.bf16.msra.mxu0 0
      %1571 = vmatprep.subr.bf16.mxu0 0
      %1572 = vmatpush1.bf16.msra.mxu0 0
      %1573 = vmatprep.subr.bf16.mxu0 0
      %1574 = vmatpush1.bf16.msra.mxu0 0
      %1575 = vmatprep.subr.bf16.mxu0 0
      %1576 = vmatpush1.bf16.msra.mxu0 0
      %1577 = vmatprep.subr.bf16.mxu0 0
      %1578 = vmatpush1.bf16.msra.mxu0 0
      %1579 = vmatprep.subr.bf16.mxu0 0
      %1580 = vmatpush1.bf16.msra.mxu0 0
      %1581 = vmatprep.subr.bf16.mxu0 0
      %1582 = vmatpush1.bf16.msra.mxu0 0
      %1583 = vmatprep.subr.bf16.mxu0 0
      %1584 = vmatpush1.bf16.msra.mxu0 0
      %1585 = vmatprep.subr.bf16.mxu0 0
      %1586 = vmatpush1.bf16.msra.mxu0 0
      %1587 = vmatprep.subr.bf16.mxu0 0
      %1588 = vmatpush1.bf16.msra.mxu0 0
      %1589 = vmatprep.subr.bf16.mxu0 0
      %1590 = vmatpush1.bf16.msra.mxu0 0
      %1591 = vmatprep.subr.bf16.mxu0 0
      %1592 = vmatpush1.bf16.msra.mxu0 0
      %1593 = vmatprep.subr.bf16.mxu0 0
      %1594 = vmatpush1.bf16.msra.mxu0 0
      %1595 = vmatprep.subr.bf16.mxu0 0
      %1596 = vmatpush1.bf16.msra.mxu0 0
      %1597 = vmatprep.mubr.bf16.mxu0 0
      %1598 = vmatmul.mubr.bf16.gmra.mrb[0].mxu0 %v1560
      %v1599 = vpop.f32.mrb[0].mxu0
      %v1600 = vadd.f32 0.0, %v1599
      %v1601 = vpop.f32.mrb[0].mxu0
      %v1602 = vpop.f32.mrb[0].mxu0
      %v1603 = vpop.f32.mrb[0].mxu0
      %1604 = vdwg.mxu0
      %v1606 = vsel %vm863, %v1326, 0
      %v1609 = vsel %vm1331, %v861, 0
      %1611 = vmatprep.subr.bf16.mxu0 0
      %1612 = vmatpush1.bf16.msra.mxu0 %v1609
      %1613 = vmatprep.subr.bf16.mxu0 0
      %1614 = vmatpush1.bf16.msra.mxu0 0
      %1615 = vmatprep.subr.bf16.mxu0 0
      %1616 = vmatpush1.bf16.msra.mxu0 0
      %1617 = vmatprep.subr.bf16.mxu0 0
      %1618 = vmatpush1.bf16.msra.mxu0 0
      %1619 = vmatprep.subr.bf16.mxu0 0
      %1620 = vmatpush1.bf16.msra.mxu0 0
      %1621 = vmatprep.subr.bf16.mxu0 0
      %1622 = vmatpush1.bf16.msra.mxu0 0
      %1623 = vmatprep.subr.bf16.mxu0 0
      %1624 = vmatpush1.bf16.msra.mxu0 0
      %1625 = vmatprep.subr.bf16.mxu0 0
      %1626 = vmatpush1.bf16.msra.mxu0 0
      %1627 = vmatprep.subr.bf16.mxu0 0
      %1628 = vmatpush1.bf16.msra.mxu0 0
      %1629 = vmatprep.subr.bf16.mxu0 0
      %1630 = vmatpush1.bf16.msra.mxu0 0
      %1631 = vmatprep.subr.bf16.mxu0 0
      %1632 = vmatpush1.bf16.msra.mxu0 0
      %1633 = vmatprep.subr.bf16.mxu0 0
      %1634 = vmatpush1.bf16.msra.mxu0 0
      %1635 = vmatprep.subr.bf16.mxu0 0
      %1636 = vmatpush1.bf16.msra.mxu0 0
      %1637 = vmatprep.subr.bf16.mxu0 0
      %1638 = vmatpush1.bf16.msra.mxu0 0
      %1639 = vmatprep.subr.bf16.mxu0 0
      %1640 = vmatpush1.bf16.msra.mxu0 0
      %1641 = vmatprep.subr.bf16.mxu0 0
      %1642 = vmatpush1.bf16.msra.mxu0 0
      %1643 = vmatprep.mubr.bf16.mxu0 0
      %1644 = vmatmul.mubr.bf16.gmra.mrb[0].mxu0 %v1606
      %v1645 = vpop.f32.mrb[0].mxu0
      %v1646 = vadd.f32 0.0, %v1645
      %v1647 = vpop.f32.mrb[0].mxu0
      %v1648 = vpop.f32.mrb[0].mxu0
      %v1649 = vpop.f32.mrb[0].mxu0
      %1650 = vdwg.mxu0
      %v1652 = vsel %vm863, %v1327, 0
      %v1655 = vsel %vm1331, %v862, 0
      %1657 = vmatprep.subr.bf16.mxu0 0
      %1658 = vmatpush1.bf16.msra.mxu0 %v1655
      %1659 = vmatprep.subr.bf16.mxu0 0
      %1660 = vmatpush1.bf16.msra.mxu0 0
      %1661 = vmatprep.subr.bf16.mxu0 0
      %1662 = vmatpush1.bf16.msra.mxu0 0
      %1663 = vmatprep.subr.bf16.mxu0 0
      %1664 = vmatpush1.bf16.msra.mxu0 0
      %1665 = vmatprep.subr.bf16.mxu0 0
      %1666 = vmatpush1.bf16.msra.mxu0 0
      %1667 = vmatprep.subr.bf16.mxu0 0
      %1668 = vmatpush1.bf16.msra.mxu0 0
      %1669 = vmatprep.subr.bf16.mxu0 0
      %1670 = vmatpush1.bf16.msra.mxu0 0
      %1671 = vmatprep.subr.bf16.mxu0 0
      %1672 = vmatpush1.bf16.msra.mxu0 0
      %1673 = vmatprep.subr.bf16.mxu0 0
      %1674 = vmatpush1.bf16.msra.mxu0 0
      %1675 = vmatprep.subr.bf16.mxu0 0
      %1676 = vmatpush1.bf16.msra.mxu0 0
      %1677 = vmatprep.subr.bf16.mxu0 0
      %1678 = vmatpush1.bf16.msra.mxu0 0
      %1679 = vmatprep.subr.bf16.mxu0 0
      %1680 = vmatpush1.bf16.msra.mxu0 0
      %1681 = vmatprep.subr.bf16.mxu0 0
      %1682 = vmatpush1.bf16.msra.mxu0 0
      %1683 = vmatprep.subr.bf16.mxu0 0
      %1684 = vmatpush1.bf16.msra.mxu0 0
      %1685 = vmatprep.subr.bf16.mxu0 0
      %1686 = vmatpush1.bf16.msra.mxu0 0
      %1687 = vmatprep.subr.bf16.mxu0 0
      %1688 = vmatpush1.bf16.msra.mxu0 0
      %1689 = vmatprep.mubr.bf16.mxu0 0
      %1690 = vmatmul.mubr.bf16.gmra.mrb[0].mxu0 %v1652
      %v1691 = vpop.f32.mrb[0].mxu0
      %v1692 = vadd.f32 0.0, %v1691
      %v1693 = vpop.f32.mrb[0].mxu0
      %v1694 = vpop.f32.mrb[0].mxu0
      %v1695 = vpop.f32.mrb[0].mxu0
      %1696 = vdwg.mxu0
      %v1697 = vpack.c.bf16 %v1370, %v1370
      %v1698 = vpack.c.bf16 %v1416, %v1416
      %v1699 = vpack.c.bf16 %v1462, %v1462
      %v1700 = vpack.c.bf16 %v1508, %v1508
      %v1701 = vpack.c.bf16 %v1554, %v1554
      %v1702 = vpack.c.bf16 %v1600, %v1600
      %v1703 = vpack.c.bf16 %v1646, %v1646
      %v1704 = vpack.c.bf16 %v1692, %v1692
      %v1707 = vunpack.c.l.b16 %v1697
      %v1708 = vunpack.c.l.b16 %v1698
      %v1709 = vpack.c.b16 %v1708, %v1707
      %v1712 = vunpack.c.l.b16 %v1699
      %v1713 = vunpack.c.l.b16 %v1700
      %v1714 = vpack.c.b16 %v1713, %v1712
      %1715 = vrot.lane.b32.xlu0 %v1714, 8
      %v1716 = vpop.permute.xlu0 %1715
      %v1719 = vunpack.c.l.b16 %v1701
      %v1720 = vunpack.c.l.b16 %v1702
      %v1721 = vpack.c.b16 %v1720, %v1719
      %1722 = vrot.lane.b32.xlu0 %v1721, 16
      %v1723 = vpop.permute.xlu0 %1722
      %v1726 = vunpack.c.l.b16 %v1703
      %v1727 = vunpack.c.l.b16 %v1704
      %v1728 = vpack.c.b16 %v1727, %v1726
      %1729 = vrot.lane.b32.xlu0 %v1728, 24
      %v1730 = vpop.permute.xlu0 %1729
      %v1733 = vsel %vm863, %v1709, %v1716
      %vm1734 = vcmask 130048
      %v1736 = vsel %vm1734, %v1733, %v1723
      %vm1737 = vcmask 195584
      %v1739 = vsel %vm1737, %v1736, %v1730
      %v1741 = vlaneseq
      %v1742 = vshrl.u32 %v1741, 7
      %v1743 = vsub.s32 0, %v1742
      %v1744 = vrot.slane %v606, %v1743
      %v1750 = vunpack.c.l.b16 %v599
      %v1751 = vunpack.c.l.b16 %v600
      %v1752 = vunpack.c.l.b16 %v601
      %v1753 = vunpack.c.l.b16 %v602
      %v1754 = vpack.c.b16 %v1751, %v1750
      %v1755 = vpack.c.b16 %v1753, %v1752
      %v1758 = vsel %vm625, %v1739, 0
      %1760 = vmatprep.subr.bf16.mxu0 0
      %1761 = vmatpush1.bf16.msra.mxu0 %v1754
      %1762 = vmatprep.subr.bf16.mxu0 0
      %1763 = vmatpush1.bf16.msra.mxu0 %v1755
      %1764 = vmatprep.subr.bf16.mxu0 0
      %1765 = vmatpush1.bf16.msra.mxu0 0
      %1766 = vmatprep.subr.bf16.mxu0 0
      %1767 = vmatpush1.bf16.msra.mxu0 0
      %1768 = vmatprep.subr.bf16.mxu0 0
      %1769 = vmatpush1.bf16.msra.mxu0 0
      %1770 = vmatprep.subr.bf16.mxu0 0
      %1771 = vmatpush1.bf16.msra.mxu0 0
      %1772 = vmatprep.subr.bf16.mxu0 0
      %1773 = vmatpush1.bf16.msra.mxu0 0
      %1774 = vmatprep.subr.bf16.mxu0 0
      %1775 = vmatpush1.bf16.msra.mxu0 0
      %1776 = vmatprep.subr.bf16.mxu0 0
      %1777 = vmatpush1.bf16.msra.mxu0 0
      %1778 = vmatprep.subr.bf16.mxu0 0
      %1779 = vmatpush1.bf16.msra.mxu0 0
      %1780 = vmatprep.subr.bf16.mxu0 0
      %1781 = vmatpush1.bf16.msra.mxu0 0
      %1782 = vmatprep.subr.bf16.mxu0 0
      %1783 = vmatpush1.bf16.msra.mxu0 0
      %1784 = vmatprep.subr.bf16.mxu0 0
      %1785 = vmatpush1.bf16.msra.mxu0 0
      %1786 = vmatprep.subr.bf16.mxu0 0
      %1787 = vmatpush1.bf16.msra.mxu0 0
      %1788 = vmatprep.subr.bf16.mxu0 0
      %1789 = vmatpush1.bf16.msra.mxu0 0
      %1790 = vmatprep.subr.bf16.mxu0 0
      %1791 = vmatpush1.bf16.msra.mxu0 0
      %1792 = vmatprep.mubr.bf16.mxu0 0
      %1793 = vmatmul.mubr.bf16.gmra.mrb[0].mxu0 %v1758
      %v1794 = vpop.f32.mrb[0].mxu0
      %v1795 = vadd.f32 %v1744, %v1794
      %v1796 = vpop.f32.mrb[0].mxu0
      %v1797 = vpop.f32.mrb[0].mxu0
      %v1798 = vadd.f32 %v1744, %v1797
      %v1799 = vpop.f32.mrb[0].mxu0
      %1800 = vdwg.mxu0
      %v1801 = vadd.f32 %v579, %v1795
      %v1802 = vadd.f32 %v580, %v1798
      %v1803 = vsel %vm625, %v1801, 0.0
      %1804 = vadd.xlane.f32.xlu0 %v1803
      %v1805 = vpop.xlane.xlu0 %1804
      %v1806 = vsel %vm625, %v1802, 0.0
      %1807 = vadd.xlane.f32.xlu0 %v1806
      %v1808 = vpop.xlane.xlu0 %1807
      %v1809 = vrcp.pop 32.0
      %v1810 = vmul.f32 %v1805, %v1809
      %v1811 = vmul.f32 %v1808, %v1809
      %v1812 = vsub.f32 %v1801, %v1810
      %v1813 = vsub.f32 %v1802, %v1811
      %v1814 = vmul.f32 %v1812, %v1812
      %v1815 = vmul.f32 %v1813, %v1813
      %v1816 = vsel %vm625, %v1814, 0.0
      %1817 = vadd.xlane.f32.xlu0 %v1816
      %v1818 = vpop.xlane.xlu0 %1817
      %v1819 = vsel %vm625, %v1815, 0.0
      %1820 = vadd.xlane.f32.xlu0 %v1819
      %v1821 = vpop.xlane.xlu0 %1820
      %v1822 = vmul.f32 %v1818, %v1809
      %v1823 = vmul.f32 %v1821, %v1809
      %v1824 = vadd.f32 %v1822, 1e-05
      %v1825 = vadd.f32 %v1823, 1e-05
      %v1826 = vrsqrt.pop %v1824
      %v1827 = vrsqrt.pop %v1825
      %v1828 = vmul.f32 %v1812, %v1826
      %v1829 = vmul.f32 %v1813, %v1827
      %v1830 = vld [vmem:[%s569] sm:$0x1]
      %v1832 = vlaneseq
      %v1833 = vshrl.u32 %v1832, 7
      %v1834 = vsub.s32 0, %v1833
      %v1835 = vrot.slane %v1830, %v1834
      %v1837 = vmul.f32 %v1828, %v1835
      %v1838 = vmul.f32 %v1829, %v1835
      %v1839 = vld [vmem:[%s572] sm:$0x1]
      %v1841 = vlaneseq
      %v1842 = vshrl.u32 %v1841, 7
      %v1843 = vsub.s32 0, %v1842
      %v1844 = vrot.slane %v1839, %v1843
      %v1846 = vadd.f32 %v1837, %v1844
      %v1847 = vadd.f32 %v1838, %v1844
      %1848 = vst.msk [vmem:[%s577] sm:$0xff] %vm625, %v1846
      %1849 = vst.msk [vmem:[%s577 + $0x8] sm:$0xff] %vm625, %v1847
      %p1850 = scmp.lt.s32.totalorder %s23, 2
      %s1851 = scalar_select %p1850, %s23, 2
      %s1852 = smul.addr %s1851, 2
      %s1853 = smul.addr %s1852, 8
      %s1854 = scalar_lea.vmem %s12, %s1853
      // Predicated region
      $region69: #{inter_modality_attention.1} parent=67 // pred_check
        %p1855 = pneg %p348
      $region70: #{inter_modality_attention.1} parent=67 // pred_check_branch
        %1857 = sbr.rel (%p1855) target = $region72
      $region71: #{inter_modality_attention.1} parent=67 // pred_region
        _
      $region72: #{inter_modality_attention.1} parent=67 // pred_fallthru
        _
    $region68: #{inter_modality_attention.1} parent=5 // pred_fallthru
      _
    %p1858 = scmp.le.s32.totalorder 2, %s18
    // Predicated region
    $region73: #{inter_modality_attention.1} parent=5 // pred_check
      %p1859 = pneg %p1858
    $region74: #{inter_modality_attention.1} parent=5 // pred_check_branch
      %1861 = sbr.rel (%p1859) target = $region76
    $region75: #{inter_modality_attention.1} parent=5 // pred_region
      %s1862 = ssub.s32 %s18, 2
      // Predicated region
      $region77: #{inter_modality_attention.1} parent=75 // pred_check
        %p1863 = pneg %p354
      $region78: #{inter_modality_attention.1} parent=75 // pred_check_branch
        %1865 = sbr.rel (%p1863) target = $region80
      $region79: #{inter_modality_attention.1} parent=75 // pred_region
        %p1866 = scmp.lt.s32.totalorder %s24, 2
        %s1867 = scalar_select %p1866, %s24, 2
        %s1868 = smul.addr %s1867, 2
        %s1869 = smul.addr %s1868, 8
        %s1870 = scalar_lea.vmem %s12, %s1869
      $region80: #{inter_modality_attention.1} parent=75 // pred_fallthru
        _
    $region76: #{inter_modality_attention.1} parent=5 // pred_fallthru
      _
  $region6: #{inter_modality_attention.1} parent=0 // loop_footer
    %s22 = sadd.s32 1, %s18
  $region7: #{inter_modality_attention.1} parent=0 // loop_footer_branch
    %17 = sbr.rel target = $region3
  $region8: #{inter_modality_attention.1} parent=0 // loop_exit
    _

</llo_original>
